<compile_context>
chip_gen: v6e
topology: v6e:2x2x1
jax: 0.10.0
libtpu: 0.0.40
codegen_flags: <defaults>
</compile_context>

<pallas_src>
import jax
import jax.numpy as jnp
from jax import lax
from jax.experimental import pallas as pl
from jax.experimental.pallas import tpu as pltpu

# Finite stand-in for -inf.  Plain Python float so kernels never capture
# array-valued constants.
NEG_INF = -1e30
_VMEM_LIMIT = 32 * 1024 * 1024        # raise v5e's 16 MiB default scoped VMEM
_LANE_TILE_MAX = 8192                 # lane-tile cap after sublane folding


def _plan_fold(B, N):
    """Fold (B, N) rows into (B*F, N/F) sublane-dense rows and pick a lane tile.

    Returns (F, R, tile, n_inner, P, nf_pad, n_pad) with R = B*F (multiple of
    32 so int8 tiling is trivially satisfied), nf_pad = tile * P * n_inner and
    n_pad = F * nf_pad (elements are padded with masked zeros up to n_pad).
    """
    F = 8
    while (B * F) % 32:
        F *= 2
    R = B * F
    per_row = -(-N // F)                                    # ceil
    cap = ((1 << 20) // (4 * R)) // 128 * 128               # ~1 MiB f32 block
    cap = max(128, min(_LANE_TILE_MAX, cap))
    if per_row <= cap:
        tile = -(-per_row // 128) * 128
        n_tiles = 1
    else:
        tile = cap
        n_tiles = -(-per_row // tile)
    if n_tiles >= 2 and n_tiles % 2 == 0:
        P, n_inner = 2, n_tiles // 2                        # v7x: one half per TC
    else:
        P, n_inner = 1, n_tiles
    nf_pad = tile * n_tiles
    n_pad = nf_pad * F
    return F, R, tile, n_inner, P, nf_pad, n_pad


# ---------------------------------------------------------------------------
# Pallas kernels — hot path of compute_joint_neg_log_likelihood
# ---------------------------------------------------------------------------
def _lse_mj_kernel(la_ref, lb_ref, mk_ref, mj_ref,
                   ma_ref, sa_ref, mb_ref, sb_ref,
                   ma_sc, sa_sc, mb_sc, sb_sc):
    """Streaming masked LSE (lane-resident accumulators) + masked joint logit."""
    j = pl.program_id(1)

    @pl.when(j == 0)
    def _():
        ma_sc[...] = jnp.full(ma_sc.shape, NEG_INF, jnp.float32)
        mb_sc[...] = jnp.full(mb_sc.shape, NEG_INF, jnp.float32)
        sa_sc[...] = jnp.zeros(sa_sc.shape, jnp.float32)
        sb_sc[...] = jnp.zeros(sb_sc.shape, jnp.float32)

    valid = mk_ref[...] != 0
    la = la_ref[...]
    lb = lb_ref[...]
    la_m = jnp.where(valid, la, NEG_INF)
    lb_m = jnp.where(valid, lb, NEG_INF)
    mj_ref[...] = jnp.where(valid, la + lb, NEG_INF)

    # online logsumexp per (sublane, lane) position — pure VPU + EUP, the
    # invalid-lane contribution is explicitly zeroed (robust to the NEG_INF
    # sentinel instead of relying on exp underflow).
    na = jnp.maximum(ma_sc[...], la_m)
    sa_sc[...] = (sa_sc[...] * jnp.exp(ma_sc[...] - na)
                  + jnp.where(valid, jnp.exp(la_m - na), 0.0))
    ma_sc[...] = na

    nb = jnp.maximum(mb_sc[...], lb_m)
    sb_sc[...] = (sb_sc[...] * jnp.exp(mb_sc[...] - nb)
                  + jnp.where(valid, jnp.exp(lb_m - nb), 0.0))
    mb_sc[...] = nb

    # single cross-lane reduction at the very end of this core's stream
    @pl.when(j == pl.num_programs(1) - 1)
    def _():
        mra = jnp.max(ma_sc[...], axis=-1, keepdims=True)
        ma_ref[...] = mra[None]
        sa_ref[...] = jnp.sum(sa_sc[...] * jnp.exp(ma_sc[...] - mra),
                              axis=-1, keepdims=True)[None]
        mrb = jnp.max(mb_sc[...], axis=-1, keepdims=True)
        mb_ref[...] = mrb[None]
        sb_ref[...] = jnp.sum(sb_sc[...] * jnp.exp(mb_sc[...] - mrb),
                              axis=-1, keepdims=True)[None]


def _nll_kernel(scal_ref, lse_ref, mj_ref, out_ref, acc_sc):
    """loss_part = -(1/num_matches) * sum over {mj - lse > thr} of (mj - lse)."""
    j = pl.program_id(1)

    @pl.when(j == 0)
    def _():
        acc_sc[...] = jnp.zeros(acc_sc.shape, jnp.float32)

    thr = scal_ref[0]
    mj = mj_ref[...]
    lpt = mj - lse_ref[...]
    # second term drops masked / padded entries (mj == NEG_INF exactly there)
    sel = (lpt > thr) & (mj > 0.5 * NEG_INF)
    acc_sc[...] += jnp.where(sel, lpt, 0.0)

    @pl.when(j == pl.num_programs(1) - 1)
    def _():
        out_ref[...] = (-scal_ref[1] * jnp.sum(acc_sc[...], keepdims=True))[None]


# ---------------------------------------------------------------------------
# pallas_call wrappers
# ---------------------------------------------------------------------------
def _joint_lse_and_mj(la_f, lb_f, mk_f, *, tile, n_inner, P):
    R, NF = la_f.shape
    data_map = lambda p, j: (0, p * n_inner + j)
    data_spec = pl.BlockSpec((R, tile), data_map)
    stat_spec = pl.BlockSpec((1, R, 1), lambda p, j: (p, 0, 0))
    stat_shape = jax.ShapeDtypeStruct((P, R, 1), jnp.float32)
    return pl.pallas_call(
        _lse_mj_kernel,
        grid=(P, n_inner),
        in_specs=[data_spec, data_spec, data_spec],
        out_specs=(pl.BlockSpec((R, tile), data_map),
                   stat_spec, stat_spec, stat_spec, stat_spec),
        out_shape=(jax.ShapeDtypeStruct((R, NF), jnp.float32),
                   stat_shape, stat_shape, stat_shape, stat_shape),
        scratch_shapes=[pltpu.VMEM((R, tile), jnp.float32)] * 4,
        compiler_params=pltpu.CompilerParams(
            dimension_semantics=("parallel", "arbitrary"),
            vmem_limit_bytes=_VMEM_LIMIT),
    )(la_f, lb_f, mk_f)


def _thresholded_joint_nll(mj_f, lse_fold, threshold, num_matches, *,
                           tile, n_inner, P):
    R, NF = mj_f.shape
    # threshold + 1/num_matches travel as SMEM scalars (no baked-in constants)
    scal = jnp.stack([threshold.astype(jnp.float32),
                      jnp.float32(1.0 / num_matches)])
    out = pl.pallas_call(
        _nll_kernel,
        grid=(P, n_inner),
        in_specs=[pl.BlockSpec(memory_space=pltpu.MemorySpace.SMEM),
                  pl.BlockSpec((R, 1), lambda p, j: (0, 0)),
                  pl.BlockSpec((R, tile), lambda p, j: (0, p * n_inner + j))],
        out_specs=pl.BlockSpec((1, 1, 1), lambda p, j: (p, 0, 0)),
        out_shape=jax.ShapeDtypeStruct((P, 1, 1), jnp.float32),
        scratch_shapes=[pltpu.VMEM((R, tile), jnp.float32)],
        compiler_params=pltpu.CompilerParams(
            dimension_semantics=("parallel", "arbitrary"),
            vmem_limit_bytes=_VMEM_LIMIT),
    )(scal, lse_fold, mj_f)
    return jnp.sum(out)


def _combine_lse(m_part, s_part, B):
    """Combine (P, B*F, 1) streaming-LSE partials into per-row logsumexp (B,)."""
    m = jnp.moveaxis(m_part[..., 0], 0, 1).reshape(B, -1)    # (B, F*P)
    s = jnp.moveaxis(s_part[..., 0], 0, 1).reshape(B, -1)
    M = jnp.max(m, axis=-1)
    S = jnp.sum(s * jnp.exp(m - M[:, None]), axis=-1)
    return M + jnp.log(jnp.maximum(S, 1e-37))                # (B,)


# ---------------------------------------------------------------------------
# Plain-JAX glue (external DeDoDe helpers used by the self-supervised path)
# ---------------------------------------------------------------------------
def _to_homogeneous(x):
    return jnp.concatenate([x, jnp.ones_like(x[..., :1])], axis=-1)


def _from_homogeneous(xh):
    return xh[..., :2] / xh[..., 2:]


def get_homog_warp(Homog, H, W):
    B = Homog.shape[0]
    gy = jnp.linspace(-1.0 + 1.0 / H, 1.0 - 1.0 / H, H)
    gx = jnp.linspace(-1.0 + 1.0 / W, 1.0 - 1.0 / W, W)
    yy, xx = jnp.meshgrid(gy, gx, indexing="ij")
    x_A = jnp.broadcast_to(jnp.stack((xx, yy), axis=-1)[None], (B, H, W, 2))
    x_A_to_B = _from_homogeneous(
        jnp.einsum("bhw,bxyw->bxyh", Homog, _to_homogeneous(x_A)))
    mask = jnp.all((x_A_to_B > -1.0) & (x_A_to_B < 1.0), axis=-1)
    warp = jnp.concatenate((x_A, x_A_to_B), axis=-1)
    return warp, mask.astype(jnp.float32)


def _cubic_coeffs(t, A=-0.75):
    def cc1(x):  # |x| <= 1
        return ((A + 2.0) * x - (A + 3.0)) * x * x + 1.0

    def cc2(x):  # 1 < |x| < 2
        return ((A * x - 5.0 * A) * x + 8.0 * A) * x - 4.0 * A

    return [cc2(t + 1.0), cc1(t), cc1(1.0 - t), cc2(2.0 - t)]


def grid_sample_bicubic(img, grid):
    # img: (B, C, H, W); grid: (B, Ho, Wo, 2) in [-1, 1];
    # torch.F.grid_sample(mode='bicubic', padding_mode='zeros',
    #                     align_corners=False) semantics.
    # TODO(synk): a dedicated Pallas gather kernel (image tile resident in
    # VMEM, scalar-prefetched row indices) would beat the XLA gather on TPU.
    B, C, H, W = img.shape
    _, Ho, Wo, _ = grid.shape
    gx, gy = grid[..., 0], grid[..., 1]
    x = ((gx + 1.0) * W - 1.0) * 0.5
    y = ((gy + 1.0) * H - 1.0) * 0.5
    x0 = jnp.floor(x)
    y0 = jnp.floor(y)
    wx = jnp.stack(_cubic_coeffs(x - x0), axis=-1)        # (B, Ho, Wo, 4)
    wy = jnp.stack(_cubic_coeffs(y - y0), axis=-1)        # (B, Ho, Wo, 4)
    x0i = x0.astype(jnp.int32)
    y0i = y0.astype(jnp.int32)

    offs = jnp.arange(-1, 3, dtype=jnp.int32)
    xs = x0i[..., None] + offs                            # (B, Ho, Wo, 4)
    ys = y0i[..., None] + offs
    x_ok = (xs >= 0) & (xs < W)
    y_ok = (ys >= 0) & (ys < H)
    xc = jnp.clip(xs, 0, W - 1)
    yc = jnp.clip(ys, 0, H - 1)

    # combined 4x4 tap weights, zeroed outside the image (padding_mode='zeros')
    wgt = (wy[..., :, None] * wx[..., None, :]
           * (y_ok[..., :, None] & x_ok[..., None, :]).astype(img.dtype))

    flat_idx = (yc[..., :, None] * W + xc[..., None, :]).reshape(B, Ho * Wo * 16)
    img_flat = img.reshape(B, C, H * W)
    vals = jnp.take_along_axis(img_flat, flat_idx[:, None, :], axis=-1)
    vals = vals.reshape(B, C, Ho, Wo, 4, 4)
    out = jnp.einsum("bchwij,bhwij->bchw", vals, wgt.astype(img.dtype))
    return out                                            # (B, C, Ho, Wo)


# ---------------------------------------------------------------------------
# KeyPointLoss
# ---------------------------------------------------------------------------
class KeyPointLoss:
    def __init__(self, smoothing_size=1, use_max_logit=False, entropy_target=80,
                 num_matches=1024, jacobian_density_adjustment=False,
                 matchability_weight=1):
        X = jnp.linspace(-1.0, 1.0, smoothing_size)
        G = jnp.exp(-X ** 2 / (2 * 1 / 2 ** 2))
        G = G / jnp.sum(G)
        self.use_max_logit = use_max_logit
        self.entropy_target = entropy_target
        self.smoothing_kernel = G[None, None, None, :]
        self.smoothing_size = smoothing_size
        self.tracked_metrics = {}
        self.center = None
        self.num_matches = num_matches
        self.jacobian_density_adjustment = jacobian_density_adjustment
        self.matchability_weight = matchability_weight

    def compute_joint_neg_log_likelihood(self, logits_A, logits_B_to_A,
                                         mask=None, num_matches=None):
        # detections default to zero in the self-supervised path, so the
        # thresholding target equals log_p_A + log_p_B_to_A exactly.
        B, K, HW = logits_A.shape
        num_matches = self.num_matches if num_matches is None else num_matches
        if num_matches > K * HW:
            raise ValueError(
                f"num_matches={num_matches} exceeds K*H*W={K * HW}; the torch "
                "kthvalue in the reference would fail for this input as well")
        N = K * HW
        if mask is None:
            mask = jnp.ones((B, HW), dtype=jnp.int8)

        F, R, tile, n_inner, P, nf_pad, n_pad = _plan_fold(B, N)

        la = logits_A.reshape(B, N).astype(jnp.float32)
        lb = logits_B_to_A.reshape(B, N).astype(jnp.float32)
        mk = mask.astype(jnp.int8)                         # 4x narrower stream
        if K > 1:
            mk = jnp.tile(mk, (1, K))                      # broadcast over K
        if n_pad != N:                                     # lane padding, masked
            pad = n_pad - N
            la = jnp.pad(la, ((0, 0), (0, pad)))
            lb = jnp.pad(lb, ((0, 0), (0, pad)))
            mk = jnp.pad(mk, ((0, 0), (0, pad)))
        la_f = la.reshape(R, nf_pad)                       # sublane folding (free)
        lb_f = lb.reshape(R, nf_pad)
        mk_f = mk.reshape(R, nf_pad)

        # Pallas pass 1: streaming masked LSE partials + masked joint logit.
        mj_f, m_a, s_a, m_b, s_b = _joint_lse_and_mj(
            la_f, lb_f, mk_f, tile=tile, n_inner=n_inner, P=P)
        lse_ab = _combine_lse(m_a, s_a, B) + _combine_lse(m_b, s_b, B)  # (B,)

        # Global k-th largest joint log-likelihood (== torch kthvalue on the
        # negation) from per-row candidates of mj: within a row the top-k of
        # (la+lb-lse) and (la+lb) coincide, so the (B, N) log-prob tensor is
        # never materialized.
        k_global = B * num_matches
        mj2 = mj_f.reshape(B, n_pad)                       # free reshape
        kk = min(n_pad, k_global)
        cand = lax.top_k(mj2, kk)[0]                       # (B, kk)
        cand_lpt = jnp.where(cand > 0.5 * NEG_INF,
                             cand - lse_ab[:, None], NEG_INF)
        threshold = lax.top_k(cand_lpt.reshape(-1), k_global)[0][k_global - 1]

        # Pallas pass 2 (fused old passes 2+3): -(1/num_matches) * sum over
        # {lpt > thr} of lpt, which equals
        # CE(log_p_A, p_target) + CE(log_p_B_to_A, p_target).
        lse_fold = jnp.repeat(lse_ab, F)[:, None].astype(jnp.float32)   # (R,1)
        return _thresholded_joint_nll(mj_f, lse_fold, threshold, num_matches,
                                      tile=tile, n_inner=n_inner, P=P)

    def self_supervised_loss(self, outputs, batch):
        kp = outputs["keypoint_logits"]                    # (2B, K, H, W)
        twoB, K, H, W = kp.shape
        B = twoB // 2
        logits_A = kp[:B].reshape(B, K, H * W)
        logits_B = kp[B:].reshape(B, K, H * W)
        keypoint_logits = jnp.concatenate((logits_A, logits_B), axis=0)

        Hom = batch["Homog_A_to_B"]
        warp_A_to_B, mask_A_to_B = get_homog_warp(Hom, H, W)
        warp_B_to_A, mask_B_to_A = get_homog_warp(jnp.linalg.inv(Hom), H, W)
        B2 = 2 * B
        warp = jnp.concatenate((warp_A_to_B, warp_B_to_A)).reshape(B2, H * W, 4)
        mask = jnp.concatenate((mask_A_to_B, mask_B_to_A)).reshape(B2, H * W)

        src = jnp.concatenate((logits_B, logits_A)).reshape(B2, K, H, W)
        backwarped = grid_sample_bicubic(
            src, warp[..., -2:].reshape(B2, H, W, 2).astype(jnp.float32))
        backwarped = backwarped.reshape(B2, K, H * W)

        joint_log_likelihood_loss = self.compute_joint_neg_log_likelihood(
            keypoint_logits, backwarped, mask=mask, num_matches=5000)
        return joint_log_likelihood_loss   # scalar; .mean() of a scalar is itself

    def supervised_loss(self, outputs, batch):
        # TODO(synk): supervised path depends on external DeDoDe helpers
        # (get_gt_warp, sample_keypoints, depth interpolation) not in-module.
        raise NotImplementedError("supervised path requires external helpers")

    def __call__(self, outputs, batch):
        if not isinstance(outputs, list):
            outputs = [outputs]
        losses = 0.0
        for output in outputs:
            if "Homog_A_to_B" in batch:
                losses = losses + self.self_supervised_loss(output, batch)
            else:
                losses = losses + self.supervised_loss(output, batch)
        return losses


if __name__ == "__main__":
    key = jax.random.PRNGKey(0)
    k1, k2 = jax.random.split(key)

    # Small shapes (H*W must be >= 5000 since the self-supervised path
    # hardcodes num_matches=5000 per row, as in the reference module).
    B, K, H, W = 2, 1, 80, 80
    keypoint_logits = jax.random.normal(k1, (2 * B, K, H, W), dtype=jnp.float32)
    # Homographies near identity (invertible; keeps most of the warp in-bounds).
    Hom = jnp.eye(3, dtype=jnp.float32)[None] + 0.05 * jax.random.normal(
        k2, (B, 3, 3), dtype=jnp.float32)

    outputs = {"keypoint_logits": keypoint_logits}
    batch = {"Homog_A_to_B": Hom}

    loss_fn = KeyPointLoss()
    loss = loss_fn(outputs, batch)
    loss = jax.block_until_ready(loss)
    assert bool(jnp.isfinite(loss)), loss
    print("KERNEL_OK")
</pallas_src>

<mosaic_0001>
module attributes {stable_mosaic.version = 11 : i64} {
  func.func @_lse_mj_kernel(%arg0: i32, %arg1: i32, %arg2: memref<32x896xf32, #tpu.memory_space<vmem>>, %arg3: memref<32x896xf32, #tpu.memory_space<vmem>>, %arg4: memref<32x896xi8, #tpu.memory_space<vmem>>, %arg5: memref<32x896xf32, #tpu.memory_space<vmem>>, %arg6: memref<1x32x1xf32, #tpu.memory_space<vmem>>, %arg7: memref<1x32x1xf32, #tpu.memory_space<vmem>>, %arg8: memref<1x32x1xf32, #tpu.memory_space<vmem>>, %arg9: memref<1x32x1xf32, #tpu.memory_space<vmem>>, %arg10: memref<32x896xf32, #tpu.memory_space<vmem>>, %arg11: memref<32x896xf32, #tpu.memory_space<vmem>>, %arg12: memref<32x896xf32, #tpu.memory_space<vmem>>, %arg13: memref<32x896xf32, #tpu.memory_space<vmem>>) attributes {dimension_semantics = [#tpu.dimension_semantics<parallel>, #tpu.dimension_semantics<arbitrary>], iteration_bounds = array<i64: 1, 1>, scalar_prefetch = 0 : i64, scratch_operands = 4 : i64, tpu.core_type = #tpu.core_type<tc>, window_params = [{transform_indices = @transform_0, window_bounds = array<i64: 32, 896>}, {transform_indices = @transform_1, window_bounds = array<i64: 32, 896>}, {transform_indices = @transform_2, window_bounds = array<i64: 32, 896>}, {transform_indices = @transform_3, window_bounds = array<i64: 32, 896>}, {transform_indices = @transform_4, window_bounds = array<i64: 1, 32, 1>}, {transform_indices = @transform_5, window_bounds = array<i64: 1, 32, 1>}, {transform_indices = @transform_6, window_bounds = array<i64: 1, 32, 1>}, {transform_indices = @transform_7, window_bounds = array<i64: 1, 32, 1>}]} {
    %c0_i32 = arith.constant 0 : i32
    %0 = arith.cmpi eq, %arg1, %c0_i32 : i32
    %1 = arith.extui %0 : i1 to i32
    %c0_i32_0 = arith.constant 0 : i32
    %2 = arith.cmpi ne, %1, %c0_i32_0 : i32
    scf.if %2 {
      %cst_34 = arith.constant -1.000000e+30 : f32
      %47 = vector.broadcast %cst_34 : f32 to vector<32x896xf32>
      %c0_35 = arith.constant 0 : index
      %c0_36 = arith.constant 0 : index
      %48 = vector.load %arg10[%c0_35, %c0_36] : memref<32x896xf32, #tpu.memory_space<vmem>>, vector<32x896xf32>
      tpu.vector_store %arg10[%c0_35, %c0_36], %47 {strides = array<i32>} : memref<32x896xf32, #tpu.memory_space<vmem>>, vector<32x896xf32>,
      %cst_37 = arith.constant -1.000000e+30 : f32
      %49 = vector.broadcast %cst_37 : f32 to vector<32x896xf32>
      %c0_38 = arith.constant 0 : index
      %c0_39 = arith.constant 0 : index
      %50 = vector.load %arg12[%c0_38, %c0_39] : memref<32x896xf32, #tpu.memory_space<vmem>>, vector<32x896xf32>
      tpu.vector_store %arg12[%c0_38, %c0_39], %49 {strides = array<i32>} : memref<32x896xf32, #tpu.memory_space<vmem>>, vector<32x896xf32>,
      %cst_40 = arith.constant 0.000000e+00 : f32
      %51 = vector.broadcast %cst_40 : f32 to vector<32x896xf32>
      %c0_41 = arith.constant 0 : index
      %c0_42 = arith.constant 0 : index
      %52 = vector.load %arg11[%c0_41, %c0_42] : memref<32x896xf32, #tpu.memory_space<vmem>>, vector<32x896xf32>
      tpu.vector_store %arg11[%c0_41, %c0_42], %51 {strides = array<i32>} : memref<32x896xf32, #tpu.memory_space<vmem>>, vector<32x896xf32>,
      %cst_43 = arith.constant 0.000000e+00 : f32
      %53 = vector.broadcast %cst_43 : f32 to vector<32x896xf32>
      %c0_44 = arith.constant 0 : index
      %c0_45 = arith.constant 0 : index
      %54 = vector.load %arg13[%c0_44, %c0_45] : memref<32x896xf32, #tpu.memory_space<vmem>>, vector<32x896xf32>
      tpu.vector_store %arg13[%c0_44, %c0_45], %53 {strides = array<i32>} : memref<32x896xf32, #tpu.memory_space<vmem>>, vector<32x896xf32>,
    } else {
    }
    %c0 = arith.constant 0 : index
    %c0_1 = arith.constant 0 : index
    %3 = vector.load %arg4[%c0, %c0_1] : memref<32x896xi8, #tpu.memory_space<vmem>>, vector<32x896xi8>
    %c0_i8 = arith.constant 0 : i8
    %4 = vector.broadcast %c0_i8 : i8 to vector<32x896xi8>
    %5 = arith.cmpi ne, %3, %4 : vector<32x896xi8>
    %c0_2 = arith.constant 0 : index
    %c0_3 = arith.constant 0 : index
    %6 = vector.load %arg2[%c0_2, %c0_3] : memref<32x896xf32, #tpu.memory_space<vmem>>, vector<32x896xf32>
    %c0_4 = arith.constant 0 : index
    %c0_5 = arith.constant 0 : index
    %7 = vector.load %arg3[%c0_4, %c0_5] : memref<32x896xf32, #tpu.memory_space<vmem>>, vector<32x896xf32>
    %cst = arith.constant -1.000000e+30 : f32
    %8 = vector.broadcast %cst : f32 to vector<32x896xf32>
    %9 = arith.select %5, %6, %8 : vector<32x896xi1>, vector<32x896xf32>
    %cst_6 = arith.constant -1.000000e+30 : f32
    %10 = vector.broadcast %cst_6 : f32 to vector<32x896xf32>
    %11 = arith.select %5, %7, %10 : vector<32x896xi1>, vector<32x896xf32>
    %12 = arith.addf %6, %7 : vector<32x896xf32>
    %cst_7 = arith.constant -1.000000e+30 : f32
    %13 = vector.broadcast %cst_7 : f32 to vector<32x896xf32>
    %14 = arith.select %5, %12, %13 : vector<32x896xi1>, vector<32x896xf32>
    %c0_8 = arith.constant 0 : index
    %c0_9 = arith.constant 0 : index
    %15 = vector.load %arg5[%c0_8, %c0_9] : memref<32x896xf32, #tpu.memory_space<vmem>>, vector<32x896xf32>
    tpu.vector_store %arg5[%c0_8, %c0_9], %14 {strides = array<i32>} : memref<32x896xf32, #tpu.memory_space<vmem>>, vector<32x896xf32>,
    %c0_10 = arith.constant 0 : index
    %c0_11 = arith.constant 0 : index
    %16 = vector.load %arg10[%c0_10, %c0_11] : memref<32x896xf32, #tpu.memory_space<vmem>>, vector<32x896xf32>
    %17 = arith.maximumf %16, %9 : vector<32x896xf32>
    %c0_12 = arith.constant 0 : index
    %c0_13 = arith.constant 0 : index
    %18 = vector.load %arg11[%c0_12, %c0_13] : memref<32x896xf32, #tpu.memory_space<vmem>>, vector<32x896xf32>
    %c0_14 = arith.constant 0 : index
    %c0_15 = arith.constant 0 : index
    %19 = vector.load %arg10[%c0_14, %c0_15] : memref<32x896xf32, #tpu.memory_space<vmem>>, vector<32x896xf32>
    %20 = arith.subf %19, %17 : vector<32x896xf32>
    %21 = math.exp %20 : vector<32x896xf32>
    %22 = arith.mulf %18, %21 : vector<32x896xf32>
    %23 = arith.subf %9, %17 : vector<32x896xf32>
    %24 = math.exp %23 : vector<32x896xf32>
    %cst_16 = arith.constant 0.000000e+00 : f32
    %25 = vector.broadcast %cst_16 : f32 to vector<32x896xf32>
    %26 = arith.select %5, %24, %25 : vector<32x896xi1>, vector<32x896xf32>
    %27 = arith.addf %22, %26 : vector<32x896xf32>
    %c0_17 = arith.constant 0 : index
    %c0_18 = arith.constant 0 : index
    %28 = vector.load %arg11[%c0_17, %c0_18] : memref<32x896xf32, #tpu.memory_space<vmem>>, vector<32x896xf32>
    tpu.vector_store %arg11[%c0_17, %c0_18], %27 {strides = array<i32>} : memref<32x896xf32, #tpu.memory_space<vmem>>, vector<32x896xf32>,
    %c0_19 = arith.constant 0 : index
    %c0_20 = arith.constant 0 : index
    %29 = vector.load %arg10[%c0_19, %c0_20] : memref<32x896xf32, #tpu.memory_space<vmem>>, vector<32x896xf32>
    tpu.vector_store %arg10[%c0_19, %c0_20], %17 {strides = array<i32>} : memref<32x896xf32, #tpu.memory_space<vmem>>, vector<32x896xf32>,
    %c0_21 = arith.constant 0 : index
    %c0_22 = arith.constant 0 : index
    %30 = vector.load %arg12[%c0_21, %c0_22] : memref<32x896xf32, #tpu.memory_space<vmem>>, vector<32x896xf32>
    %31 = arith.maximumf %30, %11 : vector<32x896xf32>
    %c0_23 = arith.constant 0 : index
    %c0_24 = arith.constant 0 : index
    %32 = vector.load %arg13[%c0_23, %c0_24] : memref<32x896xf32, #tpu.memory_space<vmem>>, vector<32x896xf32>
    %c0_25 = arith.constant 0 : index
    %c0_26 = arith.constant 0 : index
    %33 = vector.load %arg12[%c0_25, %c0_26] : memref<32x896xf32, #tpu.memory_space<vmem>>, vector<32x896xf32>
    %34 = arith.subf %33, %31 : vector<32x896xf32>
    %35 = math.exp %34 : vector<32x896xf32>
    %36 = arith.mulf %32, %35 : vector<32x896xf32>
    %37 = arith.subf %11, %31 : vector<32x896xf32>
    %38 = math.exp %37 : vector<32x896xf32>
    %cst_27 = arith.constant 0.000000e+00 : f32
    %39 = vector.broadcast %cst_27 : f32 to vector<32x896xf32>
    %40 = arith.select %5, %38, %39 : vector<32x896xi1>, vector<32x896xf32>
    %41 = arith.addf %36, %40 : vector<32x896xf32>
    %c0_28 = arith.constant 0 : index
    %c0_29 = arith.constant 0 : index
    %42 = vector.load %arg13[%c0_28, %c0_29] : memref<32x896xf32, #tpu.memory_space<vmem>>, vector<32x896xf32>
    tpu.vector_store %arg13[%c0_28, %c0_29], %41 {strides = array<i32>} : memref<32x896xf32, #tpu.memory_space<vmem>>, vector<32x896xf32>,
    %c0_30 = arith.constant 0 : index
    %c0_31 = arith.constant 0 : index
    %43 = vector.load %arg12[%c0_30, %c0_31] : memref<32x896xf32, #tpu.memory_space<vmem>>, vector<32x896xf32>
    tpu.vector_store %arg12[%c0_30, %c0_31], %31 {strides = array<i32>} : memref<32x896xf32, #tpu.memory_space<vmem>>, vector<32x896xf32>,
    %c0_i32_32 = arith.constant 0 : i32
    %44 = arith.cmpi eq, %arg1, %c0_i32_32 : i32
    %45 = arith.extui %44 : i1 to i32
    %c0_i32_33 = arith.constant 0 : i32
    %46 = arith.cmpi ne, %45, %c0_i32_33 : i32
    scf.if %46 {
      %c0_34 = arith.constant 0 : index
      %c0_35 = arith.constant 0 : index
      %47 = vector.load %arg10[%c0_34, %c0_35] : memref<32x896xf32, #tpu.memory_space<vmem>>, vector<32x896xf32>
      %cst_36 = arith.constant dense<0xFF800000> : vector<32xf32>
      %48 = vector.multi_reduction <maximumf>, %47, %cst_36 [1] : vector<32x896xf32> to vector<32xf32>
      %49 = vector.shape_cast %48 : vector<32xf32> to vector<32x1xf32>
      %50 = vector.shape_cast %49 : vector<32x1xf32> to vector<1x32x1xf32>
      %c0_37 = arith.constant 0 : index
      %c0_38 = arith.constant 0 : index
      %c0_39 = arith.constant 0 : index
      %51 = vector.load %arg6[%c0_37, %c0_38, %c0_39] : memref<1x32x1xf32, #tpu.memory_space<vmem>>, vector<1x32x1xf32>
      tpu.vector_store %arg6[%c0_37, %c0_38, %c0_39], %50 {strides = array<i32>} : memref<1x32x1xf32, #tpu.memory_space<vmem>>, vector<1x32x1xf32>,
      %c0_40 = arith.constant 0 : index
      %c0_41 = arith.constant 0 : index
      %52 = vector.load %arg11[%c0_40, %c0_41] : memref<32x896xf32, #tpu.memory_space<vmem>>, vector<32x896xf32>
      %c0_42 = arith.constant 0 : index
      %c0_43 = arith.constant 0 : index
      %53 = vector.load %arg10[%c0_42, %c0_43] : memref<32x896xf32, #tpu.memory_space<vmem>>, vector<32x896xf32>
      %54 = vector.broadcast %49 : vector<32x1xf32> to vector<32x896xf32>
      %55 = arith.subf %53, %54 : vector<32x896xf32>
      %56 = math.exp %55 : vector<32x896xf32>
      %57 = arith.mulf %52, %56 : vector<32x896xf32>
      %cst_44 = arith.constant dense<0.000000e+00> : vector<32xf32>
      %58 = vector.multi_reduction <add>, %57, %cst_44 [1] : vector<32x896xf32> to vector<32xf32>
      %59 = vector.shape_cast %58 : vector<32xf32> to vector<32x1xf32>
      %60 = vector.shape_cast %59 : vector<32x1xf32> to vector<1x32x1xf32>
      %c0_45 = arith.constant 0 : index
      %c0_46 = arith.constant 0 : index
      %c0_47 = arith.constant 0 : index
      %61 = vector.load %arg7[%c0_45, %c0_46, %c0_47] : memref<1x32x1xf32, #tpu.memory_space<vmem>>, vector<1x32x1xf32>
      tpu.vector_store %arg7[%c0_45, %c0_46, %c0_47], %60 {strides = array<i32>} : memref<1x32x1xf32, #tpu.memory_space<vmem>>, vector<1x32x1xf32>,
      %c0_48 = arith.constant 0 : index
      %c0_49 = arith.constant 0 : index
      %62 = vector.load %arg12[%c0_48, %c0_49] : memref<32x896xf32, #tpu.memory_space<vmem>>, vector<32x896xf32>
      %cst_50 = arith.constant dense<0xFF800000> : vector<32xf32>
      %63 = vector.multi_reduction <maximumf>, %62, %cst_50 [1] : vector<32x896xf32> to vector<32xf32>
      %64 = vector.shape_cast %63 : vector<32xf32> to vector<32x1xf32>
      %65 = vector.shape_cast %64 : vector<32x1xf32> to vector<1x32x1xf32>
      %c0_51 = arith.constant 0 : index
      %c0_52 = arith.constant 0 : index
      %c0_53 = arith.constant 0 : index
      %66 = vector.load %arg8[%c0_51, %c0_52, %c0_53] : memref<1x32x1xf32, #tpu.memory_space<vmem>>, vector<1x32x1xf32>
      tpu.vector_store %arg8[%c0_51, %c0_52, %c0_53], %65 {strides = array<i32>} : memref<1x32x1xf32, #tpu.memory_space<vmem>>, vector<1x32x1xf32>,
      %c0_54 = arith.constant 0 : index
      %c0_55 = arith.constant 0 : index
      %67 = vector.load %arg13[%c0_54, %c0_55] : memref<32x896xf32, #tpu.memory_space<vmem>>, vector<32x896xf32>
      %c0_56 = arith.constant 0 : index
      %c0_57 = arith.constant 0 : index
      %68 = vector.load %arg12[%c0_56, %c0_57] : memref<32x896xf32, #tpu.memory_space<vmem>>, vector<32x896xf32>
      %69 = vector.broadcast %64 : vector<32x1xf32> to vector<32x896xf32>
      %70 = arith.subf %68, %69 : vector<32x896xf32>
      %71 = math.exp %70 : vector<32x896xf32>
      %72 = arith.mulf %67, %71 : vector<32x896xf32>
      %cst_58 = arith.constant dense<0.000000e+00> : vector<32xf32>
      %73 = vector.multi_reduction <add>, %72, %cst_58 [1] : vector<32x896xf32> to vector<32xf32>
      %74 = vector.shape_cast %73 : vector<32xf32> to vector<32x1xf32>
      %75 = vector.shape_cast %74 : vector<32x1xf32> to vector<1x32x1xf32>
      %c0_59 = arith.constant 0 : index
      %c0_60 = arith.constant 0 : index
      %c0_61 = arith.constant 0 : index
      %76 = vector.load %arg9[%c0_59, %c0_60, %c0_61] : memref<1x32x1xf32, #tpu.memory_space<vmem>>, vector<1x32x1xf32>
      tpu.vector_store %arg9[%c0_59, %c0_60, %c0_61], %75 {strides = array<i32>} : memref<1x32x1xf32, #tpu.memory_space<vmem>>, vector<1x32x1xf32>,
    } else {
    }
    return
  }
  func.func @transform_0(%arg0: i32, %arg1: i32) -> (i32, i32) {
    %c1_i32 = arith.constant 1 : i32
    %0 = arith.muli %arg0, %c1_i32 : i32
    %1 = arith.addi %0, %arg1 : i32
    %c0_i32 = arith.constant 0 : i32
    %c0_i32_0 = arith.constant 0 : i32
    return %c0_i32, %1 : i32, i32
  }
  func.func @transform_1(%arg0: i32, %arg1: i32) -> (i32, i32) {
    %c1_i32 = arith.constant 1 : i32
    %0 = arith.muli %arg0, %c1_i32 : i32
    %1 = arith.addi %0, %arg1 : i32
    %c0_i32 = arith.constant 0 : i32
    %c0_i32_0 = arith.constant 0 : i32
    return %c0_i32, %1 : i32, i32
  }
  func.func @transform_2(%arg0: i32, %arg1: i32) -> (i32, i32) {
    %c1_i32 = arith.constant 1 : i32
    %0 = arith.muli %arg0, %c1_i32 : i32
    %1 = arith.addi %0, %arg1 : i32
    %c0_i32 = arith.constant 0 : i32
    %c0_i32_0 = arith.constant 0 : i32
    return %c0_i32, %1 : i32, i32
  }
  func.func @transform_3(%arg0: i32, %arg1: i32) -> (i32, i32) {
    %c1_i32 = arith.constant 1 : i32
    %0 = arith.muli %arg0, %c1_i32 : i32
    %1 = arith.addi %0, %arg1 : i32
    %c0_i32 = arith.constant 0 : i32
    %c0_i32_0 = arith.constant 0 : i32
    return %c0_i32, %1 : i32, i32
  }
  func.func @transform_4(%arg0: i32, %arg1: i32) -> (i32, i32, i32) {
    %c0_i32 = arith.constant 0 : i32
    %c0_i32_0 = arith.constant 0 : i32
    %c0_i32_1 = arith.constant 0 : i32
    return %arg0, %c0_i32, %c0_i32_0 : i32, i32, i32
  }
  func.func @transform_5(%arg0: i32, %arg1: i32) -> (i32, i32, i32) {
    %c0_i32 = arith.constant 0 : i32
    %c0_i32_0 = arith.constant 0 : i32
    %c0_i32_1 = arith.constant 0 : i32
    return %arg0, %c0_i32, %c0_i32_0 : i32, i32, i32
  }
  func.func @transform_6(%arg0: i32, %arg1: i32) -> (i32, i32, i32) {
    %c0_i32 = arith.constant 0 : i32
    %c0_i32_0 = arith.constant 0 : i32
    %c0_i32_1 = arith.constant 0 : i32
    return %arg0, %c0_i32, %c0_i32_0 : i32, i32, i32
  }
  func.func @transform_7(%arg0: i32, %arg1: i32) -> (i32, i32, i32) {
    %c0_i32 = arith.constant 0 : i32
    %c0_i32_0 = arith.constant 0 : i32
    %c0_i32_1 = arith.constant 0 : i32
    return %arg0, %c0_i32, %c0_i32_0 : i32, i32, i32
  }
}

</mosaic_0001>

<llo_original>
// kernel: tpu_custom_call.1
$region0: #{tpu_custom_call.1}
  #allocation0 [shape = 'u32[]', space=smem, size = 0x4, offset = 0x4, fixed_abs, tag = 'smem constant byte address 0x4 - core index']
  #allocation1 [shape = 'u32[144,128]{1,0:T(1,128)}', space=vmem, size = 0x12000, scoped, tag = 'internal scratch']
  #allocation2 [shape = 'f32[32,896]{1,0:T(8,128)}', space=vmem, size = 0x1c000, scoped, tag = 'scratch operand']
  #allocation3 [shape = 'f32[32,896]{1,0:T(8,128)}', space=vmem, size = 0x1c000, scoped, tag = 'scratch operand']
  #allocation4 [shape = 'f32[32,896]{1,0:T(8,128)}', space=vmem, size = 0x1c000, scoped, tag = 'scratch operand']
  #allocation5 [shape = 'f32[32,896]{1,0:T(8,128)}', space=vmem, size = 0x1c000, scoped, tag = 'scratch operand']
  %s0 = inlined_call_operand.hbm [shape: f32[32,896], index: 0, kind: input, shape index: {}]
  %s1 = inlined_call_operand.hbm [shape: f32[32,896], index: 1, kind: input, shape index: {}]
  %s2 = inlined_call_operand.hbm [shape: s8[32,896], index: 2, kind: input, shape index: {}]
  %s3 = inlined_call_operand.hbm [shape: f32[32,896], index: 3, kind: output, shape index: {0}]
  %s4 = inlined_call_operand.vmem [shape: f32[1,32,1], index: 4, kind: output, shape index: {1}]
  %s5 = inlined_call_operand.vmem [shape: f32[1,32,1], index: 5, kind: output, shape index: {2}]
  %s6 = inlined_call_operand.vmem [shape: f32[1,32,1], index: 6, kind: output, shape index: {3}]
  %s7 = inlined_call_operand.vmem [shape: f32[1,32,1], index: 7, kind: output, shape index: {4}]
  %8 = xla_tuple %s3, %s4, %s5, %s6, %s7
  %s9 = sld [smem:[#allocation0]]
  $region74: #{tpu_custom_call.1} parent=0
    _
  %s11 = ssub.s32 1, %s9
  %s12 = scalar_select 0, %s11, %s9
  $region1: #{tpu_custom_call.1} parent=0
    #allocation6 [shape = 'u8[114688]{0}', space=vmem, size = 0x1c000, scoped, tag = 'input window, operand 0, single buffered']
    #allocation7 [shape = 's32[1]{0}', space=sflag, size = 0x4, scoped, tag = 'scoped memory for tpu_custom_call.1']
    #allocation8 [shape = 's32[1]{0}', space=sflag, size = 0x4, scoped, tag = 'scoped memory for tpu_custom_call.1']
    #allocation9 [shape = 'u8[114688]{0}', space=vmem, size = 0x1c000, scoped, tag = 'input window, operand 1, single buffered']
    #allocation10 [shape = 's32[1]{0}', space=sflag, size = 0x4, scoped, tag = 'scoped memory for tpu_custom_call.1']
    #allocation11 [shape = 'u8[28672]{0}', space=vmem, size = 0x7000, scoped, tag = 'input window, operand 2, single buffered']
    #allocation12 [shape = 'u8[114688]{0}', space=vmem, size = 0x1c000, scoped, tag = 'output window, operand 0, single buffered']
    %13 = vsyncpa [#allocation7], 0
    %14 = vsyncpa [#allocation10], 0
    %15 = vsyncpa [#allocation8], 0
    // Predicated region
    $region2: #{tpu_custom_call.1} parent=1 // pred_check
      _
    $region3: #{tpu_custom_call.1} parent=1 // pred_check_branch
      %17 = sbr.rel (0) target = $region5
    $region4: #{tpu_custom_call.1} parent=1 // pred_region
      %s18 = sadd.s32 0, 0
      %s19 = smul.u32 7, %s18
      %s21 = ssub.s32 3584, 3584
      %22 = vsyncadd [#allocation7], %s21
      %s23 = smul.addr %s19, 128
      %s24 = scalar_lea.hbm %s0, %s23
      %s25 = sshll.u32 [#allocation6], 4
      %s26 = int_to_ptr.vmem [resolvable:$true] %s25
      %31 = dma.hbm_to_vmem [thread:$0]  %s24, 3584, %s26, [#allocation7], 896, 896, 56
    $region5: #{tpu_custom_call.1} parent=1 // pred_fallthru
      _
    // Predicated region
    $region6: #{tpu_custom_call.1} parent=1 // pred_check
      _
    $region7: #{tpu_custom_call.1} parent=1 // pred_check_branch
      %33 = sbr.rel (0) target = $region9
    $region8: #{tpu_custom_call.1} parent=1 // pred_region
      %s34 = sadd.s32 0, 0
      %s35 = smul.u32 7, %s34
      %s37 = ssub.s32 3584, 3584
      %38 = vsyncadd [#allocation10], %s37
      %s39 = smul.addr %s35, 128
      %s40 = scalar_lea.hbm %s1, %s39
      %s41 = sshll.u32 [#allocation9], 4
      %s42 = int_to_ptr.vmem [resolvable:$true] %s41
      %47 = dma.hbm_to_vmem [thread:$0]  %s40, 3584, %s42, [#allocation10], 896, 896, 56
    $region9: #{tpu_custom_call.1} parent=1 // pred_fallthru
      _
    // Predicated region
    $region10: #{tpu_custom_call.1} parent=1 // pred_check
      _
    $region11: #{tpu_custom_call.1} parent=1 // pred_check_branch
      %49 = sbr.rel (0) target = $region13
    $region12: #{tpu_custom_call.1} parent=1 // pred_region
      %s50 = sadd.s32 0, 0
      %s51 = smul.u32 7, %s50
      %s53 = ssub.s32 896, 896
      %54 = vsyncadd [#allocation10], %s53
      %s55 = smul.addr %s51, 128
      %s56 = scalar_lea.hbm %s2, %s55
      %s58 = sshll.u32 [#allocation11], 4
      %s59 = int_to_ptr.vmem [resolvable:$true] %s58
      %61 = dma.hbm_to_vmem [thread:$0]  %s56, 896, %s59, [#allocation10]
    $region13: #{tpu_custom_call.1} parent=1 // pred_fallthru
      _
    // Predicated region
    $region14: #{tpu_custom_call.1} parent=1 // pred_check
      _
    $region15: #{tpu_custom_call.1} parent=1 // pred_check_branch
      %63 = sbr.rel (0) target = $region17
    $region16: #{tpu_custom_call.1} parent=1 // pred_region
      %64 = dma.done [#allocation7], 3584
    $region17: #{tpu_custom_call.1} parent=1 // pred_fallthru
      _
    // Predicated region
    $region18: #{tpu_custom_call.1} parent=1 // pred_check
      _
    $region19: #{tpu_custom_call.1} parent=1 // pred_check_branch
      %66 = sbr.rel (0) target = $region21
    $region20: #{tpu_custom_call.1} parent=1 // pred_region
      %67 = dma.done [#allocation10], 3584
    $region21: #{tpu_custom_call.1} parent=1 // pred_fallthru
      _
    // Predicated region
    $region22: #{tpu_custom_call.1} parent=1 // pred_check
      _
    $region23: #{tpu_custom_call.1} parent=1 // pred_check_branch
      %69 = sbr.rel (0) target = $region25
    $region24: #{tpu_custom_call.1} parent=1 // pred_region
      %70 = dma.done [#allocation10], 896
    $region25: #{tpu_custom_call.1} parent=1 // pred_fallthru
      _
    %s71 = sadd.s32 0, 0
    %s72 = smul.u32 7, %s71
    %s73 = sadd.s32 0, 0
    %s74 = smul.u32 7, %s73
    %s75 = sadd.s32 0, 0
    %s76 = smul.u32 7, %s75
    %s77 = sadd.s32 0, 0
    %s78 = smul.u32 7, %s77
    %p81 = scmp.eq.s32.totalorder 0, 0
    // Predicated region
    $region26: #{tpu_custom_call.1} parent=1 // pred_check
      %p82 = pneg %p81
    $region27: #{tpu_custom_call.1} parent=1 // pred_check_branch
      %84 = sbr.rel (%p82) target = $region29
    $region28: #{tpu_custom_call.1} parent=1 // pred_region
      %85 = vst [vmem:[#allocation2] sm:$0xff] -1e+30
      %86 = vst [vmem:[#allocation2 + $0x8] sm:$0xff] -1e+30
      %87 = vst [vmem:[#allocation2 + $0x10] sm:$0xff] -1e+30
      %88 = vst [vmem:[#allocation2 + $0x18] sm:$0xff] -1e+30
      %89 = vst [vmem:[#allocation2 + $0x20] sm:$0xff] -1e+30
      %90 = vst [vmem:[#allocation2 + $0x28] sm:$0xff] -1e+30
      %91 = vst [vmem:[#allocation2 + $0x30] sm:$0xff] -1e+30
      %92 = vst [vmem:[#allocation2 + $0x38] sm:$0xff] -1e+30
      %93 = vst [vmem:[#allocation2 + $0x40] sm:$0xff] -1e+30
      %94 = vst [vmem:[#allocation2 + $0x48] sm:$0xff] -1e+30
      %95 = vst [vmem:[#allocation2 + $0x50] sm:$0xff] -1e+30
      %96 = vst [vmem:[#allocation2 + $0x58] sm:$0xff] -1e+30
      %97 = vst [vmem:[#allocation2 + $0x60] sm:$0xff] -1e+30
      %98 = vst [vmem:[#allocation2 + $0x68] sm:$0xff] -1e+30
      %99 = vst [vmem:[#allocation2 + $0x70] sm:$0xff] -1e+30
      %100 = vst [vmem:[#allocation2 + $0x78] sm:$0xff] -1e+30
      %101 = vst [vmem:[#allocation2 + $0x80] sm:$0xff] -1e+30
      %102 = vst [vmem:[#allocation2 + $0x88] sm:$0xff] -1e+30
      %103 = vst [vmem:[#allocation2 + $0x90] sm:$0xff] -1e+30
      %104 = vst [vmem:[#allocation2 + $0x98] sm:$0xff] -1e+30
      %105 = vst [vmem:[#allocation2 + $0xa0] sm:$0xff] -1e+30
      %106 = vst [vmem:[#allocation2 + $0xa8] sm:$0xff] -1e+30
      %107 = vst [vmem:[#allocation2 + $0xb0] sm:$0xff] -1e+30
      %108 = vst [vmem:[#allocation2 + $0xb8] sm:$0xff] -1e+30
      %109 = vst [vmem:[#allocation2 + $0xc0] sm:$0xff] -1e+30
      %110 = vst [vmem:[#allocation2 + $0xc8] sm:$0xff] -1e+30
      %111 = vst [vmem:[#allocation2 + $0xd0] sm:$0xff] -1e+30
      %112 = vst [vmem:[#allocation2 + $0xd8] sm:$0xff] -1e+30
      %113 = vst [vmem:[#allocation4] sm:$0xff] -1e+30
      %114 = vst [vmem:[#allocation4 + $0x8] sm:$0xff] -1e+30
      %115 = vst [vmem:[#allocation4 + $0x10] sm:$0xff] -1e+30
      %116 = vst [vmem:[#allocation4 + $0x18] sm:$0xff] -1e+30
      %117 = vst [vmem:[#allocation4 + $0x20] sm:$0xff] -1e+30
      %118 = vst [vmem:[#allocation4 + $0x28] sm:$0xff] -1e+30
      %119 = vst [vmem:[#allocation4 + $0x30] sm:$0xff] -1e+30
      %120 = vst [vmem:[#allocation4 + $0x38] sm:$0xff] -1e+30
      %121 = vst [vmem:[#allocation4 + $0x40] sm:$0xff] -1e+30
      %122 = vst [vmem:[#allocation4 + $0x48] sm:$0xff] -1e+30
      %123 = vst [vmem:[#allocation4 + $0x50] sm:$0xff] -1e+30
      %124 = vst [vmem:[#allocation4 + $0x58] sm:$0xff] -1e+30
      %125 = vst [vmem:[#allocation4 + $0x60] sm:$0xff] -1e+30
      %126 = vst [vmem:[#allocation4 + $0x68] sm:$0xff] -1e+30
      %127 = vst [vmem:[#allocation4 + $0x70] sm:$0xff] -1e+30
      %128 = vst [vmem:[#allocation4 + $0x78] sm:$0xff] -1e+30
      %129 = vst [vmem:[#allocation4 + $0x80] sm:$0xff] -1e+30
      %130 = vst [vmem:[#allocation4 + $0x88] sm:$0xff] -1e+30
      %131 = vst [vmem:[#allocation4 + $0x90] sm:$0xff] -1e+30
      %132 = vst [vmem:[#allocation4 + $0x98] sm:$0xff] -1e+30
      %133 = vst [vmem:[#allocation4 + $0xa0] sm:$0xff] -1e+30
      %134 = vst [vmem:[#allocation4 + $0xa8] sm:$0xff] -1e+30
      %135 = vst [vmem:[#allocation4 + $0xb0] sm:$0xff] -1e+30
      %136 = vst [vmem:[#allocation4 + $0xb8] sm:$0xff] -1e+30
      %137 = vst [vmem:[#allocation4 + $0xc0] sm:$0xff] -1e+30
      %138 = vst [vmem:[#allocation4 + $0xc8] sm:$0xff] -1e+30
      %139 = vst [vmem:[#allocation4 + $0xd0] sm:$0xff] -1e+30
      %140 = vst [vmem:[#allocation4 + $0xd8] sm:$0xff] -1e+30
      %141 = vst [vmem:[#allocation3] sm:$0xff] 0.0
      %142 = vst [vmem:[#allocation3 + $0x8] sm:$0xff] 0.0
      %143 = vst [vmem:[#allocation3 + $0x10] sm:$0xff] 0.0
      %144 = vst [vmem:[#allocation3 + $0x18] sm:$0xff] 0.0
      %145 = vst [vmem:[#allocation3 + $0x20] sm:$0xff] 0.0
      %146 = vst [vmem:[#allocation3 + $0x28] sm:$0xff] 0.0
      %147 = vst [vmem:[#allocation3 + $0x30] sm:$0xff] 0.0
      %148 = vst [vmem:[#allocation3 + $0x38] sm:$0xff] 0.0
      %149 = vst [vmem:[#allocation3 + $0x40] sm:$0xff] 0.0
      %150 = vst [vmem:[#allocation3 + $0x48] sm:$0xff] 0.0
      %151 = vst [vmem:[#allocation3 + $0x50] sm:$0xff] 0.0
      %152 = vst [vmem:[#allocation3 + $0x58] sm:$0xff] 0.0
      %153 = vst [vmem:[#allocation3 + $0x60] sm:$0xff] 0.0
      %154 = vst [vmem:[#allocation3 + $0x68] sm:$0xff] 0.0
      %155 = vst [vmem:[#allocation3 + $0x70] sm:$0xff] 0.0
      %156 = vst [vmem:[#allocation3 + $0x78] sm:$0xff] 0.0
      %157 = vst [vmem:[#allocation3 + $0x80] sm:$0xff] 0.0
      %158 = vst [vmem:[#allocation3 + $0x88] sm:$0xff] 0.0
      %159 = vst [vmem:[#allocation3 + $0x90] sm:$0xff] 0.0
      %160 = vst [vmem:[#allocation3 + $0x98] sm:$0xff] 0.0
      %161 = vst [vmem:[#allocation3 + $0xa0] sm:$0xff] 0.0
      %162 = vst [vmem:[#allocation3 + $0xa8] sm:$0xff] 0.0
      %163 = vst [vmem:[#allocation3 + $0xb0] sm:$0xff] 0.0
      %164 = vst [vmem:[#allocation3 + $0xb8] sm:$0xff] 0.0
      %165 = vst [vmem:[#allocation3 + $0xc0] sm:$0xff] 0.0
      %166 = vst [vmem:[#allocation3 + $0xc8] sm:$0xff] 0.0
      %167 = vst [vmem:[#allocation3 + $0xd0] sm:$0xff] 0.0
      %168 = vst [vmem:[#allocation3 + $0xd8] sm:$0xff] 0.0
      %169 = vst [vmem:[#allocation5] sm:$0xff] 0.0
      %170 = vst [vmem:[#allocation5 + $0x8] sm:$0xff] 0.0
      %171 = vst [vmem:[#allocation5 + $0x10] sm:$0xff] 0.0
      %172 = vst [vmem:[#allocation5 + $0x18] sm:$0xff] 0.0
      %173 = vst [vmem:[#allocation5 + $0x20] sm:$0xff] 0.0
      %174 = vst [vmem:[#allocation5 + $0x28] sm:$0xff] 0.0
      %175 = vst [vmem:[#allocation5 + $0x30] sm:$0xff] 0.0
      %176 = vst [vmem:[#allocation5 + $0x38] sm:$0xff] 0.0
      %177 = vst [vmem:[#allocation5 + $0x40] sm:$0xff] 0.0
      %178 = vst [vmem:[#allocation5 + $0x48] sm:$0xff] 0.0
      %179 = vst [vmem:[#allocation5 + $0x50] sm:$0xff] 0.0
      %180 = vst [vmem:[#allocation5 + $0x58] sm:$0xff] 0.0
      %181 = vst [vmem:[#allocation5 + $0x60] sm:$0xff] 0.0
      %182 = vst [vmem:[#allocation5 + $0x68] sm:$0xff] 0.0
      %183 = vst [vmem:[#allocation5 + $0x70] sm:$0xff] 0.0
      %184 = vst [vmem:[#allocation5 + $0x78] sm:$0xff] 0.0
      %185 = vst [vmem:[#allocation5 + $0x80] sm:$0xff] 0.0
      %186 = vst [vmem:[#allocation5 + $0x88] sm:$0xff] 0.0
      %187 = vst [vmem:[#allocation5 + $0x90] sm:$0xff] 0.0
      %188 = vst [vmem:[#allocation5 + $0x98] sm:$0xff] 0.0
      %189 = vst [vmem:[#allocation5 + $0xa0] sm:$0xff] 0.0
      %190 = vst [vmem:[#allocation5 + $0xa8] sm:$0xff] 0.0
      %191 = vst [vmem:[#allocation5 + $0xb0] sm:$0xff] 0.0
      %192 = vst [vmem:[#allocation5 + $0xb8] sm:$0xff] 0.0
      %193 = vst [vmem:[#allocation5 + $0xc0] sm:$0xff] 0.0
      %194 = vst [vmem:[#allocation5 + $0xc8] sm:$0xff] 0.0
      %195 = vst [vmem:[#allocation5 + $0xd0] sm:$0xff] 0.0
      %196 = vst [vmem:[#allocation5 + $0xd8] sm:$0xff] 0.0
    $region29: #{tpu_custom_call.1} parent=1 // pred_fallthru
      _
    %v197 = vld [vmem:[#allocation11] sm:$0xff]
    %v198 = vld [vmem:[#allocation11 + $0x8] sm:$0xff]
    %v199 = vld [vmem:[#allocation11 + $0x10] sm:$0xff]
    %v200 = vld [vmem:[#allocation11 + $0x18] sm:$0xff]
    %v201 = vld [vmem:[#allocation11 + $0x20] sm:$0xff]
    %v202 = vld [vmem:[#allocation11 + $0x28] sm:$0xff]
    %v203 = vld [vmem:[#allocation11 + $0x30] sm:$0xff]
    %vm204 = vnez %v197
    %vm205 = vnez %v198
    %vm206 = vnez %v199
    %vm207 = vnez %v200
    %vm208 = vnez %v201
    %vm209 = vnez %v202
    %vm210 = vnez %v203
    %v211 = vld [vmem:[#allocation6] sm:$0xff]
    %v212 = vld [vmem:[#allocation6 + $0x8] sm:$0xff]
    %v213 = vld [vmem:[#allocation6 + $0x10] sm:$0xff]
    %v214 = vld [vmem:[#allocation6 + $0x18] sm:$0xff]
    %v215 = vld [vmem:[#allocation6 + $0x20] sm:$0xff]
    %v216 = vld [vmem:[#allocation6 + $0x28] sm:$0xff]
    %v217 = vld [vmem:[#allocation6 + $0x30] sm:$0xff]
    %v218 = vld [vmem:[#allocation6 + $0x38] sm:$0xff]
    %v219 = vld [vmem:[#allocation6 + $0x40] sm:$0xff]
    %v220 = vld [vmem:[#allocation6 + $0x48] sm:$0xff]
    %v221 = vld [vmem:[#allocation6 + $0x50] sm:$0xff]
    %v222 = vld [vmem:[#allocation6 + $0x58] sm:$0xff]
    %v223 = vld [vmem:[#allocation6 + $0x60] sm:$0xff]
    %v224 = vld [vmem:[#allocation6 + $0x68] sm:$0xff]
    %v225 = vld [vmem:[#allocation6 + $0x70] sm:$0xff]
    %v226 = vld [vmem:[#allocation6 + $0x78] sm:$0xff]
    %v227 = vld [vmem:[#allocation6 + $0x80] sm:$0xff]
    %v228 = vld [vmem:[#allocation6 + $0x88] sm:$0xff]
    %v229 = vld [vmem:[#allocation6 + $0x90] sm:$0xff]
    %v230 = vld [vmem:[#allocation6 + $0x98] sm:$0xff]
    %v231 = vld [vmem:[#allocation6 + $0xa0] sm:$0xff]
    %v232 = vld [vmem:[#allocation6 + $0xa8] sm:$0xff]
    %v233 = vld [vmem:[#allocation6 + $0xb0] sm:$0xff]
    %v234 = vld [vmem:[#allocation6 + $0xb8] sm:$0xff]
    %v235 = vld [vmem:[#allocation6 + $0xc0] sm:$0xff]
    %v236 = vld [vmem:[#allocation6 + $0xc8] sm:$0xff]
    %v237 = vld [vmem:[#allocation6 + $0xd0] sm:$0xff]
    %v238 = vld [vmem:[#allocation6 + $0xd8] sm:$0xff]
    %v239 = vld [vmem:[#allocation9] sm:$0xff]
    %v240 = vld [vmem:[#allocation9 + $0x8] sm:$0xff]
    %v241 = vld [vmem:[#allocation9 + $0x10] sm:$0xff]
    %v242 = vld [vmem:[#allocation9 + $0x18] sm:$0xff]
    %v243 = vld [vmem:[#allocation9 + $0x20] sm:$0xff]
    %v244 = vld [vmem:[#allocation9 + $0x28] sm:$0xff]
    %v245 = vld [vmem:[#allocation9 + $0x30] sm:$0xff]
    %v246 = vld [vmem:[#allocation9 + $0x38] sm:$0xff]
    %v247 = vld [vmem:[#allocation9 + $0x40] sm:$0xff]
    %v248 = vld [vmem:[#allocation9 + $0x48] sm:$0xff]
    %v249 = vld [vmem:[#allocation9 + $0x50] sm:$0xff]
    %v250 = vld [vmem:[#allocation9 + $0x58] sm:$0xff]
    %v251 = vld [vmem:[#allocation9 + $0x60] sm:$0xff]
    %v252 = vld [vmem:[#allocation9 + $0x68] sm:$0xff]
    %v253 = vld [vmem:[#allocation9 + $0x70] sm:$0xff]
    %v254 = vld [vmem:[#allocation9 + $0x78] sm:$0xff]
    %v255 = vld [vmem:[#allocation9 + $0x80] sm:$0xff]
    %v256 = vld [vmem:[#allocation9 + $0x88] sm:$0xff]
    %v257 = vld [vmem:[#allocation9 + $0x90] sm:$0xff]
    %v258 = vld [vmem:[#allocation9 + $0x98] sm:$0xff]
    %v259 = vld [vmem:[#allocation9 + $0xa0] sm:$0xff]
    %v260 = vld [vmem:[#allocation9 + $0xa8] sm:$0xff]
    %v261 = vld [vmem:[#allocation9 + $0xb0] sm:$0xff]
    %v262 = vld [vmem:[#allocation9 + $0xb8] sm:$0xff]
    %v263 = vld [vmem:[#allocation9 + $0xc0] sm:$0xff]
    %v264 = vld [vmem:[#allocation9 + $0xc8] sm:$0xff]
    %v265 = vld [vmem:[#allocation9 + $0xd0] sm:$0xff]
    %v266 = vld [vmem:[#allocation9 + $0xd8] sm:$0xff]
    %v267 = vsel %vm204, 16843009, 0
    %v268 = vsel %vm205, 16843009, 0
    %v269 = vsel %vm206, 16843009, 0
    %v270 = vsel %vm207, 16843009, 0
    %v271 = vsel %vm208, 16843009, 0
    %v272 = vsel %vm209, 16843009, 0
    %v273 = vsel %vm210, 16843009, 0
    %v274 = vunpack.c.0.s8 %v267
    %v275 = vunpack.c.0.s8 %v268
    %v276 = vunpack.c.0.s8 %v269
    %v277 = vunpack.c.0.s8 %v270
    %v278 = vunpack.c.0.s8 %v271
    %v279 = vunpack.c.0.s8 %v272
    %v280 = vunpack.c.0.s8 %v273
    %v281 = vunpack.c.1.s8 %v267
    %v282 = vunpack.c.1.s8 %v268
    %v283 = vunpack.c.1.s8 %v269
    %v284 = vunpack.c.1.s8 %v270
    %v285 = vunpack.c.1.s8 %v271
    %v286 = vunpack.c.1.s8 %v272
    %v287 = vunpack.c.1.s8 %v273
    %v288 = vunpack.c.2.s8 %v267
    %v289 = vunpack.c.2.s8 %v268
    %v290 = vunpack.c.2.s8 %v269
    %v291 = vunpack.c.2.s8 %v270
    %v292 = vunpack.c.2.s8 %v271
    %v293 = vunpack.c.2.s8 %v272
    %v294 = vunpack.c.2.s8 %v273
    %v295 = vunpack.c.3.s8 %v267
    %v296 = vunpack.c.3.s8 %v268
    %v297 = vunpack.c.3.s8 %v269
    %v298 = vunpack.c.3.s8 %v270
    %v299 = vunpack.c.3.s8 %v271
    %v300 = vunpack.c.3.s8 %v272
    %v301 = vunpack.c.3.s8 %v273
    %v302 = vpack.c.b16 %v275, %v274
    %v303 = vpack.c.b16 %v277, %v276
    %v304 = vpack.c.b8 %v303, %v302
    %v305 = vpack.c.b16 %v279, %v278
    %v306 = vpack.c.b16 %v280, %v280
    %v307 = vpack.c.b8 %v306, %v305
    %v308 = vpack.c.b16 %v282, %v281
    %v309 = vpack.c.b16 %v284, %v283
    %v310 = vpack.c.b8 %v309, %v308
    %v311 = vpack.c.b16 %v286, %v285
    %v312 = vpack.c.b16 %v287, %v287
    %v313 = vpack.c.b8 %v312, %v311
    %v314 = vpack.c.b16 %v289, %v288
    %v315 = vpack.c.b16 %v291, %v290
    %v316 = vpack.c.b8 %v315, %v314
    %v317 = vpack.c.b16 %v293, %v292
    %v318 = vpack.c.b16 %v294, %v294
    %v319 = vpack.c.b8 %v318, %v317
    %v320 = vpack.c.b16 %v296, %v295
    %v321 = vpack.c.b16 %v298, %v297
    %v322 = vpack.c.b8 %v321, %v320
    %v323 = vpack.c.b16 %v300, %v299
    %v324 = vpack.c.b16 %v301, %v301
    %v325 = vpack.c.b8 %v324, %v323
    %vm326 = vnez %v304
    %vm327 = vnez %v307
    %vm328 = vnez %v310
    %vm329 = vnez %v313
    %vm330 = vnez %v316
    %vm331 = vnez %v319
    %vm332 = vnez %v322
    %vm333 = vnez %v325
    %v334 = vsel %vm326, 16843009, 0
    %v335 = vsel %vm327, 16843009, 0
    %v336 = vsel %vm328, 16843009, 0
    %v337 = vsel %vm329, 16843009, 0
    %v338 = vsel %vm330, 16843009, 0
    %v339 = vsel %vm331, 16843009, 0
    %v340 = vsel %vm332, 16843009, 0
    %v341 = vsel %vm333, 16843009, 0
    %v342 = vunpack.c.0.s8 %v334
    %v343 = vunpack.c.1.s8 %v334
    %v344 = vunpack.c.2.s8 %v334
    %v345 = vunpack.c.3.s8 %v334
    %v346 = vunpack.c.0.s8 %v335
    %v347 = vunpack.c.1.s8 %v335
    %v348 = vunpack.c.2.s8 %v335
    %v349 = vunpack.c.0.s8 %v336
    %v350 = vunpack.c.1.s8 %v336
    %v351 = vunpack.c.2.s8 %v336
    %v352 = vunpack.c.3.s8 %v336
    %v353 = vunpack.c.0.s8 %v337
    %v354 = vunpack.c.1.s8 %v337
    %v355 = vunpack.c.2.s8 %v337
    %v356 = vunpack.c.0.s8 %v338
    %v357 = vunpack.c.1.s8 %v338
    %v358 = vunpack.c.2.s8 %v338
    %v359 = vunpack.c.3.s8 %v338
    %v360 = vunpack.c.0.s8 %v339
    %v361 = vunpack.c.1.s8 %v339
    %v362 = vunpack.c.2.s8 %v339
    %v363 = vunpack.c.0.s8 %v340
    %v364 = vunpack.c.1.s8 %v340
    %v365 = vunpack.c.2.s8 %v340
    %v366 = vunpack.c.3.s8 %v340
    %v367 = vunpack.c.0.s8 %v341
    %v368 = vunpack.c.1.s8 %v341
    %v369 = vunpack.c.2.s8 %v341
    %vm370 = vcmp.ne.s32.totalorder %v342, 0
    %vm371 = vcmp.ne.s32.totalorder %v343, 0
    %vm372 = vcmp.ne.s32.totalorder %v344, 0
    %vm373 = vcmp.ne.s32.totalorder %v345, 0
    %vm374 = vcmp.ne.s32.totalorder %v346, 0
    %vm375 = vcmp.ne.s32.totalorder %v347, 0
    %vm376 = vcmp.ne.s32.totalorder %v348, 0
    %vm377 = vcmp.ne.s32.totalorder %v349, 0
    %vm378 = vcmp.ne.s32.totalorder %v350, 0
    %vm379 = vcmp.ne.s32.totalorder %v351, 0
    %vm380 = vcmp.ne.s32.totalorder %v352, 0
    %vm381 = vcmp.ne.s32.totalorder %v353, 0
    %vm382 = vcmp.ne.s32.totalorder %v354, 0
    %vm383 = vcmp.ne.s32.totalorder %v355, 0
    %vm384 = vcmp.ne.s32.totalorder %v356, 0
    %vm385 = vcmp.ne.s32.totalorder %v357, 0
    %vm386 = vcmp.ne.s32.totalorder %v358, 0
    %vm387 = vcmp.ne.s32.totalorder %v359, 0
    %vm388 = vcmp.ne.s32.totalorder %v360, 0
    %vm389 = vcmp.ne.s32.totalorder %v361, 0
    %vm390 = vcmp.ne.s32.totalorder %v362, 0
    %vm391 = vcmp.ne.s32.totalorder %v363, 0
    %vm392 = vcmp.ne.s32.totalorder %v364, 0
    %vm393 = vcmp.ne.s32.totalorder %v365, 0
    %vm394 = vcmp.ne.s32.totalorder %v366, 0
    %vm395 = vcmp.ne.s32.totalorder %v367, 0
    %vm396 = vcmp.ne.s32.totalorder %v368, 0
    %vm397 = vcmp.ne.s32.totalorder %v369, 0
    %v398 = vsel %vm370, %v211, -1e+30
    %v399 = vsel %vm371, %v212, -1e+30
    %v400 = vsel %vm372, %v213, -1e+30
    %v401 = vsel %vm373, %v214, -1e+30
    %v402 = vsel %vm374, %v215, -1e+30
    %v403 = vsel %vm375, %v216, -1e+30
    %v404 = vsel %vm376, %v217, -1e+30
    %v405 = vsel %vm377, %v218, -1e+30
    %v406 = vsel %vm378, %v219, -1e+30
    %v407 = vsel %vm379, %v220, -1e+30
    %v408 = vsel %vm380, %v221, -1e+30
    %v409 = vsel %vm381, %v222, -1e+30
    %v410 = vsel %vm382, %v223, -1e+30
    %v411 = vsel %vm383, %v224, -1e+30
    %v412 = vsel %vm384, %v225, -1e+30
    %v413 = vsel %vm385, %v226, -1e+30
    %v414 = vsel %vm386, %v227, -1e+30
    %v415 = vsel %vm387, %v228, -1e+30
    %v416 = vsel %vm388, %v229, -1e+30
    %v417 = vsel %vm389, %v230, -1e+30
    %v418 = vsel %vm390, %v231, -1e+30
    %v419 = vsel %vm391, %v232, -1e+30
    %v420 = vsel %vm392, %v233, -1e+30
    %v421 = vsel %vm393, %v234, -1e+30
    %v422 = vsel %vm394, %v235, -1e+30
    %v423 = vsel %vm395, %v236, -1e+30
    %v424 = vsel %vm396, %v237, -1e+30
    %v425 = vsel %vm397, %v238, -1e+30
    %v426 = vsel %vm370, %v239, -1e+30
    %v427 = vsel %vm371, %v240, -1e+30
    %v428 = vsel %vm372, %v241, -1e+30
    %v429 = vsel %vm373, %v242, -1e+30
    %v430 = vsel %vm374, %v243, -1e+30
    %v431 = vsel %vm375, %v244, -1e+30
    %v432 = vsel %vm376, %v245, -1e+30
    %v433 = vsel %vm377, %v246, -1e+30
    %v434 = vsel %vm378, %v247, -1e+30
    %v435 = vsel %vm379, %v248, -1e+30
    %v436 = vsel %vm380, %v249, -1e+30
    %v437 = vsel %vm381, %v250, -1e+30
    %v438 = vsel %vm382, %v251, -1e+30
    %v439 = vsel %vm383, %v252, -1e+30
    %v440 = vsel %vm384, %v253, -1e+30
    %v441 = vsel %vm385, %v254, -1e+30
    %v442 = vsel %vm386, %v255, -1e+30
    %v443 = vsel %vm387, %v256, -1e+30
    %v444 = vsel %vm388, %v257, -1e+30
    %v445 = vsel %vm389, %v258, -1e+30
    %v446 = vsel %vm390, %v259, -1e+30
    %v447 = vsel %vm391, %v260, -1e+30
    %v448 = vsel %vm392, %v261, -1e+30
    %v449 = vsel %vm393, %v262, -1e+30
    %v450 = vsel %vm394, %v263, -1e+30
    %v451 = vsel %vm395, %v264, -1e+30
    %v452 = vsel %vm396, %v265, -1e+30
    %v453 = vsel %vm397, %v266, -1e+30
    %v454 = vadd.f32 %v211, %v239
    %v455 = vadd.f32 %v212, %v240
    %v456 = vadd.f32 %v213, %v241
    %v457 = vadd.f32 %v214, %v242
    %v458 = vadd.f32 %v215, %v243
    %v459 = vadd.f32 %v216, %v244
    %v460 = vadd.f32 %v217, %v245
    %v461 = vadd.f32 %v218, %v246
    %v462 = vadd.f32 %v219, %v247
    %v463 = vadd.f32 %v220, %v248
    %v464 = vadd.f32 %v221, %v249
    %v465 = vadd.f32 %v222, %v250
    %v466 = vadd.f32 %v223, %v251
    %v467 = vadd.f32 %v224, %v252
    %v468 = vadd.f32 %v225, %v253
    %v469 = vadd.f32 %v226, %v254
    %v470 = vadd.f32 %v227, %v255
    %v471 = vadd.f32 %v228, %v256
    %v472 = vadd.f32 %v229, %v257
    %v473 = vadd.f32 %v230, %v258
    %v474 = vadd.f32 %v231, %v259
    %v475 = vadd.f32 %v232, %v260
    %v476 = vadd.f32 %v233, %v261
    %v477 = vadd.f32 %v234, %v262
    %v478 = vadd.f32 %v235, %v263
    %v479 = vadd.f32 %v236, %v264
    %v480 = vadd.f32 %v237, %v265
    %v481 = vadd.f32 %v238, %v266
    %v482 = vsel %vm370, %v454, -1e+30
    %v483 = vsel %vm371, %v455, -1e+30
    %v484 = vsel %vm372, %v456, -1e+30
    %v485 = vsel %vm373, %v457, -1e+30
    %v486 = vsel %vm374, %v458, -1e+30
    %v487 = vsel %vm375, %v459, -1e+30
    %v488 = vsel %vm376, %v460, -1e+30
    %v489 = vsel %vm377, %v461, -1e+30
    %v490 = vsel %vm378, %v462, -1e+30
    %v491 = vsel %vm379, %v463, -1e+30
    %v492 = vsel %vm380, %v464, -1e+30
    %v493 = vsel %vm381, %v465, -1e+30
    %v494 = vsel %vm382, %v466, -1e+30
    %v495 = vsel %vm383, %v467, -1e+30
    %v496 = vsel %vm384, %v468, -1e+30
    %v497 = vsel %vm385, %v469, -1e+30
    %v498 = vsel %vm386, %v470, -1e+30
    %v499 = vsel %vm387, %v471, -1e+30
    %v500 = vsel %vm388, %v472, -1e+30
    %v501 = vsel %vm389, %v473, -1e+30
    %v502 = vsel %vm390, %v474, -1e+30
    %v503 = vsel %vm391, %v475, -1e+30
    %v504 = vsel %vm392, %v476, -1e+30
    %v505 = vsel %vm393, %v477, -1e+30
    %v506 = vsel %vm394, %v478, -1e+30
    %v507 = vsel %vm395, %v479, -1e+30
    %v508 = vsel %vm396, %v480, -1e+30
    %v509 = vsel %vm397, %v481, -1e+30
    %510 = vst [vmem:[#allocation12] sm:$0xff] %v482
    %511 = vst [vmem:[#allocation12 + $0x8] sm:$0xff] %v483
    %512 = vst [vmem:[#allocation12 + $0x10] sm:$0xff] %v484
    %513 = vst [vmem:[#allocation12 + $0x18] sm:$0xff] %v485
    %514 = vst [vmem:[#allocation12 + $0x20] sm:$0xff] %v486
    %515 = vst [vmem:[#allocation12 + $0x28] sm:$0xff] %v487
    %516 = vst [vmem:[#allocation12 + $0x30] sm:$0xff] %v488
    %517 = vst [vmem:[#allocation12 + $0x38] sm:$0xff] %v489
    %518 = vst [vmem:[#allocation12 + $0x40] sm:$0xff] %v490
    %519 = vst [vmem:[#allocation12 + $0x48] sm:$0xff] %v491
    %520 = vst [vmem:[#allocation12 + $0x50] sm:$0xff] %v492
    %521 = vst [vmem:[#allocation12 + $0x58] sm:$0xff] %v493
    %522 = vst [vmem:[#allocation12 + $0x60] sm:$0xff] %v494
    %523 = vst [vmem:[#allocation12 + $0x68] sm:$0xff] %v495
    %524 = vst [vmem:[#allocation12 + $0x70] sm:$0xff] %v496
    %525 = vst [vmem:[#allocation12 + $0x78] sm:$0xff] %v497
    %526 = vst [vmem:[#allocation12 + $0x80] sm:$0xff] %v498
    %527 = vst [vmem:[#allocation12 + $0x88] sm:$0xff] %v499
    %528 = vst [vmem:[#allocation12 + $0x90] sm:$0xff] %v500
    %529 = vst [vmem:[#allocation12 + $0x98] sm:$0xff] %v501
    %530 = vst [vmem:[#allocation12 + $0xa0] sm:$0xff] %v502
    %531 = vst [vmem:[#allocation12 + $0xa8] sm:$0xff] %v503
    %532 = vst [vmem:[#allocation12 + $0xb0] sm:$0xff] %v504
    %533 = vst [vmem:[#allocation12 + $0xb8] sm:$0xff] %v505
    %534 = vst [vmem:[#allocation12 + $0xc0] sm:$0xff] %v506
    %535 = vst [vmem:[#allocation12 + $0xc8] sm:$0xff] %v507
    %536 = vst [vmem:[#allocation12 + $0xd0] sm:$0xff] %v508
    %537 = vst [vmem:[#allocation12 + $0xd8] sm:$0xff] %v509
    %v538 = vld [vmem:[#allocation2] sm:$0xff]
    %v539 = vld [vmem:[#allocation2 + $0x8] sm:$0xff]
    %v540 = vld [vmem:[#allocation2 + $0x10] sm:$0xff]
    %v541 = vld [vmem:[#allocation2 + $0x18] sm:$0xff]
    %v542 = vld [vmem:[#allocation2 + $0x20] sm:$0xff]
    %v543 = vld [vmem:[#allocation2 + $0x28] sm:$0xff]
    %v544 = vld [vmem:[#allocation2 + $0x30] sm:$0xff]
    %v545 = vld [vmem:[#allocation2 + $0x38] sm:$0xff]
    %v546 = vld [vmem:[#allocation2 + $0x40] sm:$0xff]
    %v547 = vld [vmem:[#allocation2 + $0x48] sm:$0xff]
    %v548 = vld [vmem:[#allocation2 + $0x50] sm:$0xff]
    %v549 = vld [vmem:[#allocation2 + $0x58] sm:$0xff]
    %v550 = vld [vmem:[#allocation2 + $0x60] sm:$0xff]
    %v551 = vld [vmem:[#allocation2 + $0x68] sm:$0xff]
    %v552 = vld [vmem:[#allocation2 + $0x70] sm:$0xff]
    %v553 = vld [vmem:[#allocation2 + $0x78] sm:$0xff]
    %v554 = vld [vmem:[#allocation2 + $0x80] sm:$0xff]
    %v555 = vld [vmem:[#allocation2 + $0x88] sm:$0xff]
    %v556 = vld [vmem:[#allocation2 + $0x90] sm:$0xff]
    %v557 = vld [vmem:[#allocation2 + $0x98] sm:$0xff]
    %v558 = vld [vmem:[#allocation2 + $0xa0] sm:$0xff]
    %v559 = vld [vmem:[#allocation2 + $0xa8] sm:$0xff]
    %v560 = vld [vmem:[#allocation2 + $0xb0] sm:$0xff]
    %v561 = vld [vmem:[#allocation2 + $0xb8] sm:$0xff]
    %v562 = vld [vmem:[#allocation2 + $0xc0] sm:$0xff]
    %v563 = vld [vmem:[#allocation2 + $0xc8] sm:$0xff]
    %v564 = vld [vmem:[#allocation2 + $0xd0] sm:$0xff]
    %v565 = vld [vmem:[#allocation2 + $0xd8] sm:$0xff]
    %v566 = vmax.f32 %v538, %v398
    %v567 = vmax.f32 %v539, %v399
    %v568 = vmax.f32 %v540, %v400
    %v569 = vmax.f32 %v541, %v401
    %v570 = vmax.f32 %v542, %v402
    %v571 = vmax.f32 %v543, %v403
    %v572 = vmax.f32 %v544, %v404
    %v573 = vmax.f32 %v545, %v405
    %v574 = vmax.f32 %v546, %v406
    %v575 = vmax.f32 %v547, %v407
    %v576 = vmax.f32 %v548, %v408
    %v577 = vmax.f32 %v549, %v409
    %v578 = vmax.f32 %v550, %v410
    %v579 = vmax.f32 %v551, %v411
    %v580 = vmax.f32 %v552, %v412
    %v581 = vmax.f32 %v553, %v413
    %v582 = vmax.f32 %v554, %v414
    %v583 = vmax.f32 %v555, %v415
    %v584 = vmax.f32 %v556, %v416
    %v585 = vmax.f32 %v557, %v417
    %v586 = vmax.f32 %v558, %v418
    %v587 = vmax.f32 %v559, %v419
    %v588 = vmax.f32 %v560, %v420
    %v589 = vmax.f32 %v561, %v421
    %v590 = vmax.f32 %v562, %v422
    %v591 = vmax.f32 %v563, %v423
    %v592 = vmax.f32 %v564, %v424
    %v593 = vmax.f32 %v565, %v425
    %v594 = vld [vmem:[#allocation3] sm:$0xff]
    %v595 = vld [vmem:[#allocation3 + $0x8] sm:$0xff]
    %v596 = vld [vmem:[#allocation3 + $0x10] sm:$0xff]
    %v597 = vld [vmem:[#allocation3 + $0x18] sm:$0xff]
    %v598 = vld [vmem:[#allocation3 + $0x20] sm:$0xff]
    %v599 = vld [vmem:[#allocation3 + $0x28] sm:$0xff]
    %v600 = vld [vmem:[#allocation3 + $0x30] sm:$0xff]
    %v601 = vld [vmem:[#allocation3 + $0x38] sm:$0xff]
    %v602 = vld [vmem:[#allocation3 + $0x40] sm:$0xff]
    %v603 = vld [vmem:[#allocation3 + $0x48] sm:$0xff]
    %v604 = vld [vmem:[#allocation3 + $0x50] sm:$0xff]
    %v605 = vld [vmem:[#allocation3 + $0x58] sm:$0xff]
    %v606 = vld [vmem:[#allocation3 + $0x60] sm:$0xff]
    %v607 = vld [vmem:[#allocation3 + $0x68] sm:$0xff]
    %v608 = vld [vmem:[#allocation3 + $0x70] sm:$0xff]
    %v609 = vld [vmem:[#allocation3 + $0x78] sm:$0xff]
    %v610 = vld [vmem:[#allocation3 + $0x80] sm:$0xff]
    %v611 = vld [vmem:[#allocation3 + $0x88] sm:$0xff]
    %v612 = vld [vmem:[#allocation3 + $0x90] sm:$0xff]
    %v613 = vld [vmem:[#allocation3 + $0x98] sm:$0xff]
    %v614 = vld [vmem:[#allocation3 + $0xa0] sm:$0xff]
    %v615 = vld [vmem:[#allocation3 + $0xa8] sm:$0xff]
    %v616 = vld [vmem:[#allocation3 + $0xb0] sm:$0xff]
    %v617 = vld [vmem:[#allocation3 + $0xb8] sm:$0xff]
    %v618 = vld [vmem:[#allocation3 + $0xc0] sm:$0xff]
    %v619 = vld [vmem:[#allocation3 + $0xc8] sm:$0xff]
    %v620 = vld [vmem:[#allocation3 + $0xd0] sm:$0xff]
    %v621 = vld [vmem:[#allocation3 + $0xd8] sm:$0xff]
    %v622 = vsub.f32 %v538, %v566
    %v623 = vsub.f32 %v539, %v567
    %v624 = vsub.f32 %v540, %v568
    %v625 = vsub.f32 %v541, %v569
    %v626 = vsub.f32 %v542, %v570
    %v627 = vsub.f32 %v543, %v571
    %v628 = vsub.f32 %v544, %v572
    %v629 = vsub.f32 %v545, %v573
    %v630 = vsub.f32 %v546, %v574
    %v631 = vsub.f32 %v547, %v575
    %v632 = vsub.f32 %v548, %v576
    %v633 = vsub.f32 %v549, %v577
    %v634 = vsub.f32 %v550, %v578
    %v635 = vsub.f32 %v551, %v579
    %v636 = vsub.f32 %v552, %v580
    %v637 = vsub.f32 %v553, %v581
    %v638 = vsub.f32 %v554, %v582
    %v639 = vsub.f32 %v555, %v583
    %v640 = vsub.f32 %v556, %v584
    %v641 = vsub.f32 %v557, %v585
    %v642 = vsub.f32 %v558, %v586
    %v643 = vsub.f32 %v559, %v587
    %v644 = vsub.f32 %v560, %v588
    %v645 = vsub.f32 %v561, %v589
    %v646 = vsub.f32 %v562, %v590
    %v647 = vsub.f32 %v563, %v591
    %v648 = vsub.f32 %v564, %v592
    %v649 = vsub.f32 %v565, %v593
    %v650 = vmul.f32 %v622, 1.442695
    %v651 = vpow.pop %v650
    %v652 = vmul.f32 %v623, 1.442695
    %v653 = vpow.pop %v652
    %v654 = vmul.f32 %v624, 1.442695
    %v655 = vpow.pop %v654
    %v656 = vmul.f32 %v625, 1.442695
    %v657 = vpow.pop %v656
    %v658 = vmul.f32 %v626, 1.442695
    %v659 = vpow.pop %v658
    %v660 = vmul.f32 %v627, 1.442695
    %v661 = vpow.pop %v660
    %v662 = vmul.f32 %v628, 1.442695
    %v663 = vpow.pop %v662
    %v664 = vmul.f32 %v629, 1.442695
    %v665 = vpow.pop %v664
    %v666 = vmul.f32 %v630, 1.442695
    %v667 = vpow.pop %v666
    %v668 = vmul.f32 %v631, 1.442695
    %v669 = vpow.pop %v668
    %v670 = vmul.f32 %v632, 1.442695
    %v671 = vpow.pop %v670
    %v672 = vmul.f32 %v633, 1.442695
    %v673 = vpow.pop %v672
    %v674 = vmul.f32 %v634, 1.442695
    %v675 = vpow.pop %v674
    %v676 = vmul.f32 %v635, 1.442695
    %v677 = vpow.pop %v676
    %v678 = vmul.f32 %v636, 1.442695
    %v679 = vpow.pop %v678
    %v680 = vmul.f32 %v637, 1.442695
    %v681 = vpow.pop %v680
    %v682 = vmul.f32 %v638, 1.442695
    %v683 = vpow.pop %v682
    %v684 = vmul.f32 %v639, 1.442695
    %v685 = vpow.pop %v684
    %v686 = vmul.f32 %v640, 1.442695
    %v687 = vpow.pop %v686
    %v688 = vmul.f32 %v641, 1.442695
    %v689 = vpow.pop %v688
    %v690 = vmul.f32 %v642, 1.442695
    %v691 = vpow.pop %v690
    %v692 = vmul.f32 %v643, 1.442695
    %v693 = vpow.pop %v692
    %v694 = vmul.f32 %v644, 1.442695
    %v695 = vpow.pop %v694
    %v696 = vmul.f32 %v645, 1.442695
    %v697 = vpow.pop %v696
    %v698 = vmul.f32 %v646, 1.442695
    %v699 = vpow.pop %v698
    %v700 = vmul.f32 %v647, 1.442695
    %v701 = vpow.pop %v700
    %v702 = vmul.f32 %v648, 1.442695
    %v703 = vpow.pop %v702
    %v704 = vmul.f32 %v649, 1.442695
    %v705 = vpow.pop %v704
    %v706 = vmul.f32 %v594, %v651
    %v707 = vmul.f32 %v595, %v653
    %v708 = vmul.f32 %v596, %v655
    %v709 = vmul.f32 %v597, %v657
    %v710 = vmul.f32 %v598, %v659
    %v711 = vmul.f32 %v599, %v661
    %v712 = vmul.f32 %v600, %v663
    %v713 = vmul.f32 %v601, %v665
    %v714 = vmul.f32 %v602, %v667
    %v715 = vmul.f32 %v603, %v669
    %v716 = vmul.f32 %v604, %v671
    %v717 = vmul.f32 %v605, %v673
    %v718 = vmul.f32 %v606, %v675
    %v719 = vmul.f32 %v607, %v677
    %v720 = vmul.f32 %v608, %v679
    %v721 = vmul.f32 %v609, %v681
    %v722 = vmul.f32 %v610, %v683
    %v723 = vmul.f32 %v611, %v685
    %v724 = vmul.f32 %v612, %v687
    %v725 = vmul.f32 %v613, %v689
    %v726 = vmul.f32 %v614, %v691
    %v727 = vmul.f32 %v615, %v693
    %v728 = vmul.f32 %v616, %v695
    %v729 = vmul.f32 %v617, %v697
    %v730 = vmul.f32 %v618, %v699
    %v731 = vmul.f32 %v619, %v701
    %v732 = vmul.f32 %v620, %v703
    %v733 = vmul.f32 %v621, %v705
    %v734 = vsub.f32 %v398, %v566
    %v735 = vsub.f32 %v399, %v567
    %v736 = vsub.f32 %v400, %v568
    %v737 = vsub.f32 %v401, %v569
    %v738 = vsub.f32 %v402, %v570
    %v739 = vsub.f32 %v403, %v571
    %v740 = vsub.f32 %v404, %v572
    %v741 = vsub.f32 %v405, %v573
    %v742 = vsub.f32 %v406, %v574
    %v743 = vsub.f32 %v407, %v575
    %v744 = vsub.f32 %v408, %v576
    %v745 = vsub.f32 %v409, %v577
    %v746 = vsub.f32 %v410, %v578
    %v747 = vsub.f32 %v411, %v579
    %v748 = vsub.f32 %v412, %v580
    %v749 = vsub.f32 %v413, %v581
    %v750 = vsub.f32 %v414, %v582
    %v751 = vsub.f32 %v415, %v583
    %v752 = vsub.f32 %v416, %v584
    %v753 = vsub.f32 %v417, %v585
    %v754 = vsub.f32 %v418, %v586
    %v755 = vsub.f32 %v419, %v587
    %v756 = vsub.f32 %v420, %v588
    %v757 = vsub.f32 %v421, %v589
    %v758 = vsub.f32 %v422, %v590
    %v759 = vsub.f32 %v423, %v591
    %v760 = vsub.f32 %v424, %v592
    %v761 = vsub.f32 %v425, %v593
    %v762 = vmul.f32 %v734, 1.442695
    %v763 = vpow.pop %v762
    %v764 = vmul.f32 %v735, 1.442695
    %v765 = vpow.pop %v764
    %v766 = vmul.f32 %v736, 1.442695
    %v767 = vpow.pop %v766
    %v768 = vmul.f32 %v737, 1.442695
    %v769 = vpow.pop %v768
    %v770 = vmul.f32 %v738, 1.442695
    %v771 = vpow.pop %v770
    %v772 = vmul.f32 %v739, 1.442695
    %v773 = vpow.pop %v772
    %v774 = vmul.f32 %v740, 1.442695
    %v775 = vpow.pop %v774
    %v776 = vmul.f32 %v741, 1.442695
    %v777 = vpow.pop %v776
    %v778 = vmul.f32 %v742, 1.442695
    %v779 = vpow.pop %v778
    %v780 = vmul.f32 %v743, 1.442695
    %v781 = vpow.pop %v780
    %v782 = vmul.f32 %v744, 1.442695
    %v783 = vpow.pop %v782
    %v784 = vmul.f32 %v745, 1.442695
    %v785 = vpow.pop %v784
    %v786 = vmul.f32 %v746, 1.442695
    %v787 = vpow.pop %v786
    %v788 = vmul.f32 %v747, 1.442695
    %v789 = vpow.pop %v788
    %v790 = vmul.f32 %v748, 1.442695
    %v791 = vpow.pop %v790
    %v792 = vmul.f32 %v749, 1.442695
    %v793 = vpow.pop %v792
    %v794 = vmul.f32 %v750, 1.442695
    %v795 = vpow.pop %v794
    %v796 = vmul.f32 %v751, 1.442695
    %v797 = vpow.pop %v796
    %v798 = vmul.f32 %v752, 1.442695
    %v799 = vpow.pop %v798
    %v800 = vmul.f32 %v753, 1.442695
    %v801 = vpow.pop %v800
    %v802 = vmul.f32 %v754, 1.442695
    %v803 = vpow.pop %v802
    %v804 = vmul.f32 %v755, 1.442695
    %v805 = vpow.pop %v804
    %v806 = vmul.f32 %v756, 1.442695
    %v807 = vpow.pop %v806
    %v808 = vmul.f32 %v757, 1.442695
    %v809 = vpow.pop %v808
    %v810 = vmul.f32 %v758, 1.442695
    %v811 = vpow.pop %v810
    %v812 = vmul.f32 %v759, 1.442695
    %v813 = vpow.pop %v812
    %v814 = vmul.f32 %v760, 1.442695
    %v815 = vpow.pop %v814
    %v816 = vmul.f32 %v761, 1.442695
    %v817 = vpow.pop %v816
    %v818 = vsel %vm370, %v763, 0.0
    %v819 = vsel %vm371, %v765, 0.0
    %v820 = vsel %vm372, %v767, 0.0
    %v821 = vsel %vm373, %v769, 0.0
    %v822 = vsel %vm374, %v771, 0.0
    %v823 = vsel %vm375, %v773, 0.0
    %v824 = vsel %vm376, %v775, 0.0
    %v825 = vsel %vm377, %v777, 0.0
    %v826 = vsel %vm378, %v779, 0.0
    %v827 = vsel %vm379, %v781, 0.0
    %v828 = vsel %vm380, %v783, 0.0
    %v829 = vsel %vm381, %v785, 0.0
    %v830 = vsel %vm382, %v787, 0.0
    %v831 = vsel %vm383, %v789, 0.0
    %v832 = vsel %vm384, %v791, 0.0
    %v833 = vsel %vm385, %v793, 0.0
    %v834 = vsel %vm386, %v795, 0.0
    %v835 = vsel %vm387, %v797, 0.0
    %v836 = vsel %vm388, %v799, 0.0
    %v837 = vsel %vm389, %v801, 0.0
    %v838 = vsel %vm390, %v803, 0.0
    %v839 = vsel %vm391, %v805, 0.0
    %v840 = vsel %vm392, %v807, 0.0
    %v841 = vsel %vm393, %v809, 0.0
    %v842 = vsel %vm394, %v811, 0.0
    %v843 = vsel %vm395, %v813, 0.0
    %v844 = vsel %vm396, %v815, 0.0
    %v845 = vsel %vm397, %v817, 0.0
    %v846 = vadd.f32 %v706, %v818
    %v847 = vadd.f32 %v707, %v819
    %v848 = vadd.f32 %v708, %v820
    %v849 = vadd.f32 %v709, %v821
    %v850 = vadd.f32 %v710, %v822
    %v851 = vadd.f32 %v711, %v823
    %v852 = vadd.f32 %v712, %v824
    %v853 = vadd.f32 %v713, %v825
    %v854 = vadd.f32 %v714, %v826
    %v855 = vadd.f32 %v715, %v827
    %v856 = vadd.f32 %v716, %v828
    %v857 = vadd.f32 %v717, %v829
    %v858 = vadd.f32 %v718, %v830
    %v859 = vadd.f32 %v719, %v831
    %v860 = vadd.f32 %v720, %v832
    %v861 = vadd.f32 %v721, %v833
    %v862 = vadd.f32 %v722, %v834
    %v863 = vadd.f32 %v723, %v835
    %v864 = vadd.f32 %v724, %v836
    %v865 = vadd.f32 %v725, %v837
    %v866 = vadd.f32 %v726, %v838
    %v867 = vadd.f32 %v727, %v839
    %v868 = vadd.f32 %v728, %v840
    %v869 = vadd.f32 %v729, %v841
    %v870 = vadd.f32 %v730, %v842
    %v871 = vadd.f32 %v731, %v843
    %v872 = vadd.f32 %v732, %v844
    %v873 = vadd.f32 %v733, %v845
    %874 = vst [vmem:[#allocation3] sm:$0xff] %v846
    %875 = vst [vmem:[#allocation3 + $0x8] sm:$0xff] %v847
    %876 = vst [vmem:[#allocation3 + $0x10] sm:$0xff] %v848
    %877 = vst [vmem:[#allocation3 + $0x18] sm:$0xff] %v849
    %878 = vst [vmem:[#allocation3 + $0x20] sm:$0xff] %v850
    %879 = vst [vmem:[#allocation3 + $0x28] sm:$0xff] %v851
    %880 = vst [vmem:[#allocation3 + $0x30] sm:$0xff] %v852
    %881 = vst [vmem:[#allocation3 + $0x38] sm:$0xff] %v853
    %882 = vst [vmem:[#allocation3 + $0x40] sm:$0xff] %v854
    %883 = vst [vmem:[#allocation3 + $0x48] sm:$0xff] %v855
    %884 = vst [vmem:[#allocation3 + $0x50] sm:$0xff] %v856
    %885 = vst [vmem:[#allocation3 + $0x58] sm:$0xff] %v857
    %886 = vst [vmem:[#allocation3 + $0x60] sm:$0xff] %v858
    %887 = vst [vmem:[#allocation3 + $0x68] sm:$0xff] %v859
    %888 = vst [vmem:[#allocation3 + $0x70] sm:$0xff] %v860
    %889 = vst [vmem:[#allocation3 + $0x78] sm:$0xff] %v861
    %890 = vst [vmem:[#allocation3 + $0x80] sm:$0xff] %v862
    %891 = vst [vmem:[#allocation3 + $0x88] sm:$0xff] %v863
    %892 = vst [vmem:[#allocation3 + $0x90] sm:$0xff] %v864
    %893 = vst [vmem:[#allocation3 + $0x98] sm:$0xff] %v865
    %894 = vst [vmem:[#allocation3 + $0xa0] sm:$0xff] %v866
    %895 = vst [vmem:[#allocation3 + $0xa8] sm:$0xff] %v867
    %896 = vst [vmem:[#allocation3 + $0xb0] sm:$0xff] %v868
    %897 = vst [vmem:[#allocation3 + $0xb8] sm:$0xff] %v869
    %898 = vst [vmem:[#allocation3 + $0xc0] sm:$0xff] %v870
    %899 = vst [vmem:[#allocation3 + $0xc8] sm:$0xff] %v871
    %900 = vst [vmem:[#allocation3 + $0xd0] sm:$0xff] %v872
    %901 = vst [vmem:[#allocation3 + $0xd8] sm:$0xff] %v873
    %902 = vst [vmem:[#allocation2] sm:$0xff] %v566
    %903 = vst [vmem:[#allocation2 + $0x8] sm:$0xff] %v567
    %904 = vst [vmem:[#allocation2 + $0x10] sm:$0xff] %v568
    %905 = vst [vmem:[#allocation2 + $0x18] sm:$0xff] %v569
    %906 = vst [vmem:[#allocation2 + $0x20] sm:$0xff] %v570
    %907 = vst [vmem:[#allocation2 + $0x28] sm:$0xff] %v571
    %908 = vst [vmem:[#allocation2 + $0x30] sm:$0xff] %v572
    %909 = vst [vmem:[#allocation2 + $0x38] sm:$0xff] %v573
    %910 = vst [vmem:[#allocation2 + $0x40] sm:$0xff] %v574
    %911 = vst [vmem:[#allocation2 + $0x48] sm:$0xff] %v575
    %912 = vst [vmem:[#allocation2 + $0x50] sm:$0xff] %v576
    %913 = vst [vmem:[#allocation2 + $0x58] sm:$0xff] %v577
    %914 = vst [vmem:[#allocation2 + $0x60] sm:$0xff] %v578
    %915 = vst [vmem:[#allocation2 + $0x68] sm:$0xff] %v579
    %916 = vst [vmem:[#allocation2 + $0x70] sm:$0xff] %v580
    %917 = vst [vmem:[#allocation2 + $0x78] sm:$0xff] %v581
    %918 = vst [vmem:[#allocation2 + $0x80] sm:$0xff] %v582
    %919 = vst [vmem:[#allocation2 + $0x88] sm:$0xff] %v583
    %920 = vst [vmem:[#allocation2 + $0x90] sm:$0xff] %v584
    %921 = vst [vmem:[#allocation2 + $0x98] sm:$0xff] %v585
    %922 = vst [vmem:[#allocation2 + $0xa0] sm:$0xff] %v586
    %923 = vst [vmem:[#allocation2 + $0xa8] sm:$0xff] %v587
    %924 = vst [vmem:[#allocation2 + $0xb0] sm:$0xff] %v588
    %925 = vst [vmem:[#allocation2 + $0xb8] sm:$0xff] %v589
    %926 = vst [vmem:[#allocation2 + $0xc0] sm:$0xff] %v590
    %927 = vst [vmem:[#allocation2 + $0xc8] sm:$0xff] %v591
    %928 = vst [vmem:[#allocation2 + $0xd0] sm:$0xff] %v592
    %929 = vst [vmem:[#allocation2 + $0xd8] sm:$0xff] %v593
    %v930 = vld [vmem:[#allocation4] sm:$0xff]
    %v931 = vld [vmem:[#allocation4 + $0x8] sm:$0xff]
    %v932 = vld [vmem:[#allocation4 + $0x10] sm:$0xff]
    %v933 = vld [vmem:[#allocation4 + $0x18] sm:$0xff]
    %v934 = vld [vmem:[#allocation4 + $0x20] sm:$0xff]
    %v935 = vld [vmem:[#allocation4 + $0x28] sm:$0xff]
    %v936 = vld [vmem:[#allocation4 + $0x30] sm:$0xff]
    %v937 = vld [vmem:[#allocation4 + $0x38] sm:$0xff]
    %v938 = vld [vmem:[#allocation4 + $0x40] sm:$0xff]
    %v939 = vld [vmem:[#allocation4 + $0x48] sm:$0xff]
    %v940 = vld [vmem:[#allocation4 + $0x50] sm:$0xff]
    %v941 = vld [vmem:[#allocation4 + $0x58] sm:$0xff]
    %v942 = vld [vmem:[#allocation4 + $0x60] sm:$0xff]
    %v943 = vld [vmem:[#allocation4 + $0x68] sm:$0xff]
    %v944 = vld [vmem:[#allocation4 + $0x70] sm:$0xff]
    %v945 = vld [vmem:[#allocation4 + $0x78] sm:$0xff]
    %v946 = vld [vmem:[#allocation4 + $0x80] sm:$0xff]
    %v947 = vld [vmem:[#allocation4 + $0x88] sm:$0xff]
    %v948 = vld [vmem:[#allocation4 + $0x90] sm:$0xff]
    %v949 = vld [vmem:[#allocation4 + $0x98] sm:$0xff]
    %v950 = vld [vmem:[#allocation4 + $0xa0] sm:$0xff]
    %v951 = vld [vmem:[#allocation4 + $0xa8] sm:$0xff]
    %v952 = vld [vmem:[#allocation4 + $0xb0] sm:$0xff]
    %v953 = vld [vmem:[#allocation4 + $0xb8] sm:$0xff]
    %v954 = vld [vmem:[#allocation4 + $0xc0] sm:$0xff]
    %v955 = vld [vmem:[#allocation4 + $0xc8] sm:$0xff]
    %v956 = vld [vmem:[#allocation4 + $0xd0] sm:$0xff]
    %v957 = vld [vmem:[#allocation4 + $0xd8] sm:$0xff]
    %v958 = vmax.f32 %v930, %v426
    %v959 = vmax.f32 %v931, %v427
    %v960 = vmax.f32 %v932, %v428
    %v961 = vmax.f32 %v933, %v429
    %v962 = vmax.f32 %v934, %v430
    %v963 = vmax.f32 %v935, %v431
    %v964 = vmax.f32 %v936, %v432
    %v965 = vmax.f32 %v937, %v433
    %v966 = vmax.f32 %v938, %v434
    %v967 = vmax.f32 %v939, %v435
    %v968 = vmax.f32 %v940, %v436
    %v969 = vmax.f32 %v941, %v437
    %v970 = vmax.f32 %v942, %v438
    %v971 = vmax.f32 %v943, %v439
    %v972 = vmax.f32 %v944, %v440
    %v973 = vmax.f32 %v945, %v441
    %v974 = vmax.f32 %v946, %v442
    %v975 = vmax.f32 %v947, %v443
    %v976 = vmax.f32 %v948, %v444
    %v977 = vmax.f32 %v949, %v445
    %v978 = vmax.f32 %v950, %v446
    %v979 = vmax.f32 %v951, %v447
    %v980 = vmax.f32 %v952, %v448
    %v981 = vmax.f32 %v953, %v449
    %v982 = vmax.f32 %v954, %v450
    %v983 = vmax.f32 %v955, %v451
    %v984 = vmax.f32 %v956, %v452
    %v985 = vmax.f32 %v957, %v453
    %v986 = vld [vmem:[#allocation5] sm:$0xff]
    %v987 = vld [vmem:[#allocation5 + $0x8] sm:$0xff]
    %v988 = vld [vmem:[#allocation5 + $0x10] sm:$0xff]
    %v989 = vld [vmem:[#allocation5 + $0x18] sm:$0xff]
    %v990 = vld [vmem:[#allocation5 + $0x20] sm:$0xff]
    %v991 = vld [vmem:[#allocation5 + $0x28] sm:$0xff]
    %v992 = vld [vmem:[#allocation5 + $0x30] sm:$0xff]
    %v993 = vld [vmem:[#allocation5 + $0x38] sm:$0xff]
    %v994 = vld [vmem:[#allocation5 + $0x40] sm:$0xff]
    %v995 = vld [vmem:[#allocation5 + $0x48] sm:$0xff]
    %v996 = vld [vmem:[#allocation5 + $0x50] sm:$0xff]
    %v997 = vld [vmem:[#allocation5 + $0x58] sm:$0xff]
    %v998 = vld [vmem:[#allocation5 + $0x60] sm:$0xff]
    %v999 = vld [vmem:[#allocation5 + $0x68] sm:$0xff]
    %v1000 = vld [vmem:[#allocation5 + $0x70] sm:$0xff]
    %v1001 = vld [vmem:[#allocation5 + $0x78] sm:$0xff]
    %v1002 = vld [vmem:[#allocation5 + $0x80] sm:$0xff]
    %v1003 = vld [vmem:[#allocation5 + $0x88] sm:$0xff]
    %v1004 = vld [vmem:[#allocation5 + $0x90] sm:$0xff]
    %v1005 = vld [vmem:[#allocation5 + $0x98] sm:$0xff]
    %v1006 = vld [vmem:[#allocation5 + $0xa0] sm:$0xff]
    %v1007 = vld [vmem:[#allocation5 + $0xa8] sm:$0xff]
    %v1008 = vld [vmem:[#allocation5 + $0xb0] sm:$0xff]
    %v1009 = vld [vmem:[#allocation5 + $0xb8] sm:$0xff]
    %v1010 = vld [vmem:[#allocation5 + $0xc0] sm:$0xff]
    %v1011 = vld [vmem:[#allocation5 + $0xc8] sm:$0xff]
    %v1012 = vld [vmem:[#allocation5 + $0xd0] sm:$0xff]
    %v1013 = vld [vmem:[#allocation5 + $0xd8] sm:$0xff]
    %v1014 = vsub.f32 %v930, %v958
    %v1015 = vsub.f32 %v931, %v959
    %v1016 = vsub.f32 %v932, %v960
    %v1017 = vsub.f32 %v933, %v961
    %v1018 = vsub.f32 %v934, %v962
    %v1019 = vsub.f32 %v935, %v963
    %v1020 = vsub.f32 %v936, %v964
    %v1021 = vsub.f32 %v937, %v965
    %v1022 = vsub.f32 %v938, %v966
    %v1023 = vsub.f32 %v939, %v967
    %v1024 = vsub.f32 %v940, %v968
    %v1025 = vsub.f32 %v941, %v969
    %v1026 = vsub.f32 %v942, %v970
    %v1027 = vsub.f32 %v943, %v971
    %v1028 = vsub.f32 %v944, %v972
    %v1029 = vsub.f32 %v945, %v973
    %v1030 = vsub.f32 %v946, %v974
    %v1031 = vsub.f32 %v947, %v975
    %v1032 = vsub.f32 %v948, %v976
    %v1033 = vsub.f32 %v949, %v977
    %v1034 = vsub.f32 %v950, %v978
    %v1035 = vsub.f32 %v951, %v979
    %v1036 = vsub.f32 %v952, %v980
    %v1037 = vsub.f32 %v953, %v981
    %v1038 = vsub.f32 %v954, %v982
    %v1039 = vsub.f32 %v955, %v983
    %v1040 = vsub.f32 %v956, %v984
    %v1041 = vsub.f32 %v957, %v985
    %v1042 = vmul.f32 %v1014, 1.442695
    %v1043 = vpow.pop %v1042
    %v1044 = vmul.f32 %v1015, 1.442695
    %v1045 = vpow.pop %v1044
    %v1046 = vmul.f32 %v1016, 1.442695
    %v1047 = vpow.pop %v1046
    %v1048 = vmul.f32 %v1017, 1.442695
    %v1049 = vpow.pop %v1048
    %v1050 = vmul.f32 %v1018, 1.442695
    %v1051 = vpow.pop %v1050
    %v1052 = vmul.f32 %v1019, 1.442695
    %v1053 = vpow.pop %v1052
    %v1054 = vmul.f32 %v1020, 1.442695
    %v1055 = vpow.pop %v1054
    %v1056 = vmul.f32 %v1021, 1.442695
    %v1057 = vpow.pop %v1056
    %v1058 = vmul.f32 %v1022, 1.442695
    %v1059 = vpow.pop %v1058
    %v1060 = vmul.f32 %v1023, 1.442695
    %v1061 = vpow.pop %v1060
    %v1062 = vmul.f32 %v1024, 1.442695
    %v1063 = vpow.pop %v1062
    %v1064 = vmul.f32 %v1025, 1.442695
    %v1065 = vpow.pop %v1064
    %v1066 = vmul.f32 %v1026, 1.442695
    %v1067 = vpow.pop %v1066
    %v1068 = vmul.f32 %v1027, 1.442695
    %v1069 = vpow.pop %v1068
    %v1070 = vmul.f32 %v1028, 1.442695
    %v1071 = vpow.pop %v1070
    %v1072 = vmul.f32 %v1029, 1.442695
    %v1073 = vpow.pop %v1072
    %v1074 = vmul.f32 %v1030, 1.442695
    %v1075 = vpow.pop %v1074
    %v1076 = vmul.f32 %v1031, 1.442695
    %v1077 = vpow.pop %v1076
    %v1078 = vmul.f32 %v1032, 1.442695
    %v1079 = vpow.pop %v1078
    %v1080 = vmul.f32 %v1033, 1.442695
    %v1081 = vpow.pop %v1080
    %v1082 = vmul.f32 %v1034, 1.442695
    %v1083 = vpow.pop %v1082
    %v1084 = vmul.f32 %v1035, 1.442695
    %v1085 = vpow.pop %v1084
    %v1086 = vmul.f32 %v1036, 1.442695
    %v1087 = vpow.pop %v1086
    %v1088 = vmul.f32 %v1037, 1.442695
    %v1089 = vpow.pop %v1088
    %v1090 = vmul.f32 %v1038, 1.442695
    %v1091 = vpow.pop %v1090
    %v1092 = vmul.f32 %v1039, 1.442695
    %v1093 = vpow.pop %v1092
    %v1094 = vmul.f32 %v1040, 1.442695
    %v1095 = vpow.pop %v1094
    %v1096 = vmul.f32 %v1041, 1.442695
    %v1097 = vpow.pop %v1096
    %v1098 = vmul.f32 %v986, %v1043
    %v1099 = vmul.f32 %v987, %v1045
    %v1100 = vmul.f32 %v988, %v1047
    %v1101 = vmul.f32 %v989, %v1049
    %v1102 = vmul.f32 %v990, %v1051
    %v1103 = vmul.f32 %v991, %v1053
    %v1104 = vmul.f32 %v992, %v1055
    %v1105 = vmul.f32 %v993, %v1057
    %v1106 = vmul.f32 %v994, %v1059
    %v1107 = vmul.f32 %v995, %v1061
    %v1108 = vmul.f32 %v996, %v1063
    %v1109 = vmul.f32 %v997, %v1065
    %v1110 = vmul.f32 %v998, %v1067
    %v1111 = vmul.f32 %v999, %v1069
    %v1112 = vmul.f32 %v1000, %v1071
    %v1113 = vmul.f32 %v1001, %v1073
    %v1114 = vmul.f32 %v1002, %v1075
    %v1115 = vmul.f32 %v1003, %v1077
    %v1116 = vmul.f32 %v1004, %v1079
    %v1117 = vmul.f32 %v1005, %v1081
    %v1118 = vmul.f32 %v1006, %v1083
    %v1119 = vmul.f32 %v1007, %v1085
    %v1120 = vmul.f32 %v1008, %v1087
    %v1121 = vmul.f32 %v1009, %v1089
    %v1122 = vmul.f32 %v1010, %v1091
    %v1123 = vmul.f32 %v1011, %v1093
    %v1124 = vmul.f32 %v1012, %v1095
    %v1125 = vmul.f32 %v1013, %v1097
    %v1126 = vsub.f32 %v426, %v958
    %v1127 = vsub.f32 %v427, %v959
    %v1128 = vsub.f32 %v428, %v960
    %v1129 = vsub.f32 %v429, %v961
    %v1130 = vsub.f32 %v430, %v962
    %v1131 = vsub.f32 %v431, %v963
    %v1132 = vsub.f32 %v432, %v964
    %v1133 = vsub.f32 %v433, %v965
    %v1134 = vsub.f32 %v434, %v966
    %v1135 = vsub.f32 %v435, %v967
    %v1136 = vsub.f32 %v436, %v968
    %v1137 = vsub.f32 %v437, %v969
    %v1138 = vsub.f32 %v438, %v970
    %v1139 = vsub.f32 %v439, %v971
    %v1140 = vsub.f32 %v440, %v972
    %v1141 = vsub.f32 %v441, %v973
    %v1142 = vsub.f32 %v442, %v974
    %v1143 = vsub.f32 %v443, %v975
    %v1144 = vsub.f32 %v444, %v976
    %v1145 = vsub.f32 %v445, %v977
    %v1146 = vsub.f32 %v446, %v978
    %v1147 = vsub.f32 %v447, %v979
    %v1148 = vsub.f32 %v448, %v980
    %v1149 = vsub.f32 %v449, %v981
    %v1150 = vsub.f32 %v450, %v982
    %v1151 = vsub.f32 %v451, %v983
    %v1152 = vsub.f32 %v452, %v984
    %v1153 = vsub.f32 %v453, %v985
    %v1154 = vmul.f32 %v1126, 1.442695
    %v1155 = vpow.pop %v1154
    %v1156 = vmul.f32 %v1127, 1.442695
    %v1157 = vpow.pop %v1156
    %v1158 = vmul.f32 %v1128, 1.442695
    %v1159 = vpow.pop %v1158
    %v1160 = vmul.f32 %v1129, 1.442695
    %v1161 = vpow.pop %v1160
    %v1162 = vmul.f32 %v1130, 1.442695
    %v1163 = vpow.pop %v1162
    %v1164 = vmul.f32 %v1131, 1.442695
    %v1165 = vpow.pop %v1164
    %v1166 = vmul.f32 %v1132, 1.442695
    %v1167 = vpow.pop %v1166
    %v1168 = vmul.f32 %v1133, 1.442695
    %v1169 = vpow.pop %v1168
    %v1170 = vmul.f32 %v1134, 1.442695
    %v1171 = vpow.pop %v1170
    %v1172 = vmul.f32 %v1135, 1.442695
    %v1173 = vpow.pop %v1172
    %v1174 = vmul.f32 %v1136, 1.442695
    %v1175 = vpow.pop %v1174
    %v1176 = vmul.f32 %v1137, 1.442695
    %v1177 = vpow.pop %v1176
    %v1178 = vmul.f32 %v1138, 1.442695
    %v1179 = vpow.pop %v1178
    %v1180 = vmul.f32 %v1139, 1.442695
    %v1181 = vpow.pop %v1180
    %v1182 = vmul.f32 %v1140, 1.442695
    %v1183 = vpow.pop %v1182
    %v1184 = vmul.f32 %v1141, 1.442695
    %v1185 = vpow.pop %v1184
    %v1186 = vmul.f32 %v1142, 1.442695
    %v1187 = vpow.pop %v1186
    %v1188 = vmul.f32 %v1143, 1.442695
    %v1189 = vpow.pop %v1188
    %v1190 = vmul.f32 %v1144, 1.442695
    %v1191 = vpow.pop %v1190
    %v1192 = vmul.f32 %v1145, 1.442695
    %v1193 = vpow.pop %v1192
    %v1194 = vmul.f32 %v1146, 1.442695
    %v1195 = vpow.pop %v1194
    %v1196 = vmul.f32 %v1147, 1.442695
    %v1197 = vpow.pop %v1196
    %v1198 = vmul.f32 %v1148, 1.442695
    %v1199 = vpow.pop %v1198
    %v1200 = vmul.f32 %v1149, 1.442695
    %v1201 = vpow.pop %v1200
    %v1202 = vmul.f32 %v1150, 1.442695
    %v1203 = vpow.pop %v1202
    %v1204 = vmul.f32 %v1151, 1.442695
    %v1205 = vpow.pop %v1204
    %v1206 = vmul.f32 %v1152, 1.442695
    %v1207 = vpow.pop %v1206
    %v1208 = vmul.f32 %v1153, 1.442695
    %v1209 = vpow.pop %v1208
    %v1210 = vsel %vm370, %v1155, 0.0
    %v1211 = vsel %vm371, %v1157, 0.0
    %v1212 = vsel %vm372, %v1159, 0.0
    %v1213 = vsel %vm373, %v1161, 0.0
    %v1214 = vsel %vm374, %v1163, 0.0
    %v1215 = vsel %vm375, %v1165, 0.0
    %v1216 = vsel %vm376, %v1167, 0.0
    %v1217 = vsel %vm377, %v1169, 0.0
    %v1218 = vsel %vm378, %v1171, 0.0
    %v1219 = vsel %vm379, %v1173, 0.0
    %v1220 = vsel %vm380, %v1175, 0.0
    %v1221 = vsel %vm381, %v1177, 0.0
    %v1222 = vsel %vm382, %v1179, 0.0
    %v1223 = vsel %vm383, %v1181, 0.0
    %v1224 = vsel %vm384, %v1183, 0.0
    %v1225 = vsel %vm385, %v1185, 0.0
    %v1226 = vsel %vm386, %v1187, 0.0
    %v1227 = vsel %vm387, %v1189, 0.0
    %v1228 = vsel %vm388, %v1191, 0.0
    %v1229 = vsel %vm389, %v1193, 0.0
    %v1230 = vsel %vm390, %v1195, 0.0
    %v1231 = vsel %vm391, %v1197, 0.0
    %v1232 = vsel %vm392, %v1199, 0.0
    %v1233 = vsel %vm393, %v1201, 0.0
    %v1234 = vsel %vm394, %v1203, 0.0
    %v1235 = vsel %vm395, %v1205, 0.0
    %v1236 = vsel %vm396, %v1207, 0.0
    %v1237 = vsel %vm397, %v1209, 0.0
    %v1238 = vadd.f32 %v1098, %v1210
    %v1239 = vadd.f32 %v1099, %v1211
    %v1240 = vadd.f32 %v1100, %v1212
    %v1241 = vadd.f32 %v1101, %v1213
    %v1242 = vadd.f32 %v1102, %v1214
    %v1243 = vadd.f32 %v1103, %v1215
    %v1244 = vadd.f32 %v1104, %v1216
    %v1245 = vadd.f32 %v1105, %v1217
    %v1246 = vadd.f32 %v1106, %v1218
    %v1247 = vadd.f32 %v1107, %v1219
    %v1248 = vadd.f32 %v1108, %v1220
    %v1249 = vadd.f32 %v1109, %v1221
    %v1250 = vadd.f32 %v1110, %v1222
    %v1251 = vadd.f32 %v1111, %v1223
    %v1252 = vadd.f32 %v1112, %v1224
    %v1253 = vadd.f32 %v1113, %v1225
    %v1254 = vadd.f32 %v1114, %v1226
    %v1255 = vadd.f32 %v1115, %v1227
    %v1256 = vadd.f32 %v1116, %v1228
    %v1257 = vadd.f32 %v1117, %v1229
    %v1258 = vadd.f32 %v1118, %v1230
    %v1259 = vadd.f32 %v1119, %v1231
    %v1260 = vadd.f32 %v1120, %v1232
    %v1261 = vadd.f32 %v1121, %v1233
    %v1262 = vadd.f32 %v1122, %v1234
    %v1263 = vadd.f32 %v1123, %v1235
    %v1264 = vadd.f32 %v1124, %v1236
    %v1265 = vadd.f32 %v1125, %v1237
    %1266 = vst [vmem:[#allocation5] sm:$0xff] %v1238
    %1267 = vst [vmem:[#allocation5 + $0x8] sm:$0xff] %v1239
    %1268 = vst [vmem:[#allocation5 + $0x10] sm:$0xff] %v1240
    %1269 = vst [vmem:[#allocation5 + $0x18] sm:$0xff] %v1241
    %1270 = vst [vmem:[#allocation5 + $0x20] sm:$0xff] %v1242
    %1271 = vst [vmem:[#allocation5 + $0x28] sm:$0xff] %v1243
    %1272 = vst [vmem:[#allocation5 + $0x30] sm:$0xff] %v1244
    %1273 = vst [vmem:[#allocation5 + $0x38] sm:$0xff] %v1245
    %1274 = vst [vmem:[#allocation5 + $0x40] sm:$0xff] %v1246
    %1275 = vst [vmem:[#allocation5 + $0x48] sm:$0xff] %v1247
    %1276 = vst [vmem:[#allocation5 + $0x50] sm:$0xff] %v1248
    %1277 = vst [vmem:[#allocation5 + $0x58] sm:$0xff] %v1249
    %1278 = vst [vmem:[#allocation5 + $0x60] sm:$0xff] %v1250
    %1279 = vst [vmem:[#allocation5 + $0x68] sm:$0xff] %v1251
    %1280 = vst [vmem:[#allocation5 + $0x70] sm:$0xff] %v1252
    %1281 = vst [vmem:[#allocation5 + $0x78] sm:$0xff] %v1253
    %1282 = vst [vmem:[#allocation5 + $0x80] sm:$0xff] %v1254
    %1283 = vst [vmem:[#allocation5 + $0x88] sm:$0xff] %v1255
    %1284 = vst [vmem:[#allocation5 + $0x90] sm:$0xff] %v1256
    %1285 = vst [vmem:[#allocation5 + $0x98] sm:$0xff] %v1257
    %1286 = vst [vmem:[#allocation5 + $0xa0] sm:$0xff] %v1258
    %1287 = vst [vmem:[#allocation5 + $0xa8] sm:$0xff] %v1259
    %1288 = vst [vmem:[#allocation5 + $0xb0] sm:$0xff] %v1260
    %1289 = vst [vmem:[#allocation5 + $0xb8] sm:$0xff] %v1261
    %1290 = vst [vmem:[#allocation5 + $0xc0] sm:$0xff] %v1262
    %1291 = vst [vmem:[#allocation5 + $0xc8] sm:$0xff] %v1263
    %1292 = vst [vmem:[#allocation5 + $0xd0] sm:$0xff] %v1264
    %1293 = vst [vmem:[#allocation5 + $0xd8] sm:$0xff] %v1265
    %1294 = vst [vmem:[#allocation4] sm:$0xff] %v958
    %1295 = vst [vmem:[#allocation4 + $0x8] sm:$0xff] %v959
    %1296 = vst [vmem:[#allocation4 + $0x10] sm:$0xff] %v960
    %1297 = vst [vmem:[#allocation4 + $0x18] sm:$0xff] %v961
    %1298 = vst [vmem:[#allocation4 + $0x20] sm:$0xff] %v962
    %1299 = vst [vmem:[#allocation4 + $0x28] sm:$0xff] %v963
    %1300 = vst [vmem:[#allocation4 + $0x30] sm:$0xff] %v964
    %1301 = vst [vmem:[#allocation4 + $0x38] sm:$0xff] %v965
    %1302 = vst [vmem:[#allocation4 + $0x40] sm:$0xff] %v966
    %1303 = vst [vmem:[#allocation4 + $0x48] sm:$0xff] %v967
    %1304 = vst [vmem:[#allocation4 + $0x50] sm:$0xff] %v968
    %1305 = vst [vmem:[#allocation4 + $0x58] sm:$0xff] %v969
    %1306 = vst [vmem:[#allocation4 + $0x60] sm:$0xff] %v970
    %1307 = vst [vmem:[#allocation4 + $0x68] sm:$0xff] %v971
    %1308 = vst [vmem:[#allocation4 + $0x70] sm:$0xff] %v972
    %1309 = vst [vmem:[#allocation4 + $0x78] sm:$0xff] %v973
    %1310 = vst [vmem:[#allocation4 + $0x80] sm:$0xff] %v974
    %1311 = vst [vmem:[#allocation4 + $0x88] sm:$0xff] %v975
    %1312 = vst [vmem:[#allocation4 + $0x90] sm:$0xff] %v976
    %1313 = vst [vmem:[#allocation4 + $0x98] sm:$0xff] %v977
    %1314 = vst [vmem:[#allocation4 + $0xa0] sm:$0xff] %v978
    %1315 = vst [vmem:[#allocation4 + $0xa8] sm:$0xff] %v979
    %1316 = vst [vmem:[#allocation4 + $0xb0] sm:$0xff] %v980
    %1317 = vst [vmem:[#allocation4 + $0xb8] sm:$0xff] %v981
    %1318 = vst [vmem:[#allocation4 + $0xc0] sm:$0xff] %v982
    %1319 = vst [vmem:[#allocation4 + $0xc8] sm:$0xff] %v983
    %1320 = vst [vmem:[#allocation4 + $0xd0] sm:$0xff] %v984
    %1321 = vst [vmem:[#allocation4 + $0xd8] sm:$0xff] %v985
    // Predicated region
    $region30: #{tpu_custom_call.1} parent=1 // pred_check
      %p1322 = pneg %p81
    $region31: #{tpu_custom_call.1} parent=1 // pred_check_branch
      %1324 = sbr.rel (%p1322) target = $region33
    $region32: #{tpu_custom_call.1} parent=1 // pred_region
      %v1325 = vld [vmem:[#allocation2] sm:$0xff]
      %v1326 = vld [vmem:[#allocation2 + $0x8] sm:$0xff]
      %v1327 = vld [vmem:[#allocation2 + $0x10] sm:$0xff]
      %v1328 = vld [vmem:[#allocation2 + $0x18] sm:$0xff]
      %v1329 = vld [vmem:[#allocation2 + $0x20] sm:$0xff]
      %v1330 = vld [vmem:[#allocation2 + $0x28] sm:$0xff]
      %v1331 = vld [vmem:[#allocation2 + $0x30] sm:$0xff]
      %v1332 = vld [vmem:[#allocation2 + $0x38] sm:$0xff]
      %v1333 = vld [vmem:[#allocation2 + $0x40] sm:$0xff]
      %v1334 = vld [vmem:[#allocation2 + $0x48] sm:$0xff]
      %v1335 = vld [vmem:[#allocation2 + $0x50] sm:$0xff]
      %v1336 = vld [vmem:[#allocation2 + $0x58] sm:$0xff]
      %v1337 = vld [vmem:[#allocation2 + $0x60] sm:$0xff]
      %v1338 = vld [vmem:[#allocation2 + $0x68] sm:$0xff]
      %v1339 = vld [vmem:[#allocation2 + $0x70] sm:$0xff]
      %v1340 = vld [vmem:[#allocation2 + $0x78] sm:$0xff]
      %v1341 = vld [vmem:[#allocation2 + $0x80] sm:$0xff]
      %v1342 = vld [vmem:[#allocation2 + $0x88] sm:$0xff]
      %v1343 = vld [vmem:[#allocation2 + $0x90] sm:$0xff]
      %v1344 = vld [vmem:[#allocation2 + $0x98] sm:$0xff]
      %v1345 = vld [vmem:[#allocation2 + $0xa0] sm:$0xff]
      %v1346 = vld [vmem:[#allocation2 + $0xa8] sm:$0xff]
      %v1347 = vld [vmem:[#allocation2 + $0xb0] sm:$0xff]
      %v1348 = vld [vmem:[#allocation2 + $0xb8] sm:$0xff]
      %v1349 = vld [vmem:[#allocation2 + $0xc0] sm:$0xff]
      %v1350 = vld [vmem:[#allocation2 + $0xc8] sm:$0xff]
      %v1351 = vld [vmem:[#allocation2 + $0xd0] sm:$0xff]
      %v1352 = vld [vmem:[#allocation2 + $0xd8] sm:$0xff]
      %v1353 = vmax.f32 %v1325, %v1326
      %v1354 = vmax.f32 %v1353, %v1327
      %v1355 = vmax.f32 %v1354, %v1328
      %v1356 = vmax.f32 %v1355, %v1329
      %v1357 = vmax.f32 %v1356, %v1330
      %v1358 = vmax.f32 %v1357, %v1331
      %1359 = vmax.xlane.f32.xlu0 %v1358
      %v1360 = vpop.xlane.xlu0 %1359
      %v1361 = vmax.f32 %v1332, %v1333
      %v1362 = vmax.f32 %v1361, %v1334
      %v1363 = vmax.f32 %v1362, %v1335
      %v1364 = vmax.f32 %v1363, %v1336
      %v1365 = vmax.f32 %v1364, %v1337
      %v1366 = vmax.f32 %v1365, %v1338
      %1367 = vmax.xlane.f32.xlu0 %v1366
      %v1368 = vpop.xlane.xlu0 %1367
      %v1369 = vmax.f32 %v1339, %v1340
      %v1370 = vmax.f32 %v1369, %v1341
      %v1371 = vmax.f32 %v1370, %v1342
      %v1372 = vmax.f32 %v1371, %v1343
      %v1373 = vmax.f32 %v1372, %v1344
      %v1374 = vmax.f32 %v1373, %v1345
      %1375 = vmax.xlane.f32.xlu0 %v1374
      %v1376 = vpop.xlane.xlu0 %1375
      %v1377 = vmax.f32 %v1346, %v1347
      %v1378 = vmax.f32 %v1377, %v1348
      %v1379 = vmax.f32 %v1378, %v1349
      %v1380 = vmax.f32 %v1379, %v1350
      %v1381 = vmax.f32 %v1380, %v1351
      %v1382 = vmax.f32 %v1381, %v1352
      %1383 = vmax.xlane.f32.xlu0 %v1382
      %v1384 = vpop.xlane.xlu0 %1383
      %vm1385 = vcmask 7168
      %1386 = vst.msk [vmem:[%s4] sm:$0xff] %vm1385, %v1360
      %1387 = vst.msk [vmem:[%s4 + $0x8] sm:$0xff] %vm1385, %v1368
      %1388 = vst.msk [vmem:[%s4 + $0x10] sm:$0xff] %vm1385, %v1376
      %1389 = vst.msk [vmem:[%s4 + $0x18] sm:$0xff] %vm1385, %v1384
      %v1390 = vld [vmem:[#allocation3] sm:$0xff]
      %v1391 = vld [vmem:[#allocation3 + $0x8] sm:$0xff]
      %v1392 = vld [vmem:[#allocation3 + $0x10] sm:$0xff]
      %v1393 = vld [vmem:[#allocation3 + $0x18] sm:$0xff]
      %v1394 = vld [vmem:[#allocation3 + $0x20] sm:$0xff]
      %v1395 = vld [vmem:[#allocation3 + $0x28] sm:$0xff]
      %v1396 = vld [vmem:[#allocation3 + $0x30] sm:$0xff]
      %v1397 = vld [vmem:[#allocation3 + $0x38] sm:$0xff]
      %v1398 = vld [vmem:[#allocation3 + $0x40] sm:$0xff]
      %v1399 = vld [vmem:[#allocation3 + $0x48] sm:$0xff]
      %v1400 = vld [vmem:[#allocation3 + $0x50] sm:$0xff]
      %v1401 = vld [vmem:[#allocation3 + $0x58] sm:$0xff]
      %v1402 = vld [vmem:[#allocation3 + $0x60] sm:$0xff]
      %v1403 = vld [vmem:[#allocation3 + $0x68] sm:$0xff]
      %v1404 = vld [vmem:[#allocation3 + $0x70] sm:$0xff]
      %v1405 = vld [vmem:[#allocation3 + $0x78] sm:$0xff]
      %v1406 = vld [vmem:[#allocation3 + $0x80] sm:$0xff]
      %v1407 = vld [vmem:[#allocation3 + $0x88] sm:$0xff]
      %v1408 = vld [vmem:[#allocation3 + $0x90] sm:$0xff]
      %v1409 = vld [vmem:[#allocation3 + $0x98] sm:$0xff]
      %v1410 = vld [vmem:[#allocation3 + $0xa0] sm:$0xff]
      %v1411 = vld [vmem:[#allocation3 + $0xa8] sm:$0xff]
      %v1412 = vld [vmem:[#allocation3 + $0xb0] sm:$0xff]
      %v1413 = vld [vmem:[#allocation3 + $0xb8] sm:$0xff]
      %v1414 = vld [vmem:[#allocation3 + $0xc0] sm:$0xff]
      %v1415 = vld [vmem:[#allocation3 + $0xc8] sm:$0xff]
      %v1416 = vld [vmem:[#allocation3 + $0xd0] sm:$0xff]
      %v1417 = vld [vmem:[#allocation3 + $0xd8] sm:$0xff]
      %v1418 = vld [vmem:[#allocation2] sm:$0xff]
      %v1419 = vld [vmem:[#allocation2 + $0x8] sm:$0xff]
      %v1420 = vld [vmem:[#allocation2 + $0x10] sm:$0xff]
      %v1421 = vld [vmem:[#allocation2 + $0x18] sm:$0xff]
      %v1422 = vld [vmem:[#allocation2 + $0x20] sm:$0xff]
      %v1423 = vld [vmem:[#allocation2 + $0x28] sm:$0xff]
      %v1424 = vld [vmem:[#allocation2 + $0x30] sm:$0xff]
      %v1425 = vld [vmem:[#allocation2 + $0x38] sm:$0xff]
      %v1426 = vld [vmem:[#allocation2 + $0x40] sm:$0xff]
      %v1427 = vld [vmem:[#allocation2 + $0x48] sm:$0xff]
      %v1428 = vld [vmem:[#allocation2 + $0x50] sm:$0xff]
      %v1429 = vld [vmem:[#allocation2 + $0x58] sm:$0xff]
      %v1430 = vld [vmem:[#allocation2 + $0x60] sm:$0xff]
      %v1431 = vld [vmem:[#allocation2 + $0x68] sm:$0xff]
      %v1432 = vld [vmem:[#allocation2 + $0x70] sm:$0xff]
      %v1433 = vld [vmem:[#allocation2 + $0x78] sm:$0xff]
      %v1434 = vld [vmem:[#allocation2 + $0x80] sm:$0xff]
      %v1435 = vld [vmem:[#allocation2 + $0x88] sm:$0xff]
      %v1436 = vld [vmem:[#allocation2 + $0x90] sm:$0xff]
      %v1437 = vld [vmem:[#allocation2 + $0x98] sm:$0xff]
      %v1438 = vld [vmem:[#allocation2 + $0xa0] sm:$0xff]
      %v1439 = vld [vmem:[#allocation2 + $0xa8] sm:$0xff]
      %v1440 = vld [vmem:[#allocation2 + $0xb0] sm:$0xff]
      %v1441 = vld [vmem:[#allocation2 + $0xb8] sm:$0xff]
      %v1442 = vld [vmem:[#allocation2 + $0xc0] sm:$0xff]
      %v1443 = vld [vmem:[#allocation2 + $0xc8] sm:$0xff]
      %v1444 = vld [vmem:[#allocation2 + $0xd0] sm:$0xff]
      %v1445 = vld [vmem:[#allocation2 + $0xd8] sm:$0xff]
      %v1446 = vsub.f32 %v1418, %v1360
      %v1447 = vsub.f32 %v1419, %v1360
      %v1448 = vsub.f32 %v1420, %v1360
      %v1449 = vsub.f32 %v1421, %v1360
      %v1450 = vsub.f32 %v1422, %v1360
      %v1451 = vsub.f32 %v1423, %v1360
      %v1452 = vsub.f32 %v1424, %v1360
      %v1453 = vsub.f32 %v1425, %v1368
      %v1454 = vsub.f32 %v1426, %v1368
      %v1455 = vsub.f32 %v1427, %v1368
      %v1456 = vsub.f32 %v1428, %v1368
      %v1457 = vsub.f32 %v1429, %v1368
      %v1458 = vsub.f32 %v1430, %v1368
      %v1459 = vsub.f32 %v1431, %v1368
      %v1460 = vsub.f32 %v1432, %v1376
      %v1461 = vsub.f32 %v1433, %v1376
      %v1462 = vsub.f32 %v1434, %v1376
      %v1463 = vsub.f32 %v1435, %v1376
      %v1464 = vsub.f32 %v1436, %v1376
      %v1465 = vsub.f32 %v1437, %v1376
      %v1466 = vsub.f32 %v1438, %v1376
      %v1467 = vsub.f32 %v1439, %v1384
      %v1468 = vsub.f32 %v1440, %v1384
      %v1469 = vsub.f32 %v1441, %v1384
      %v1470 = vsub.f32 %v1442, %v1384
      %v1471 = vsub.f32 %v1443, %v1384
      %v1472 = vsub.f32 %v1444, %v1384
      %v1473 = vsub.f32 %v1445, %v1384
      %v1474 = vmul.f32 %v1446, 1.442695
      %v1475 = vpow.pop %v1474
      %v1476 = vmul.f32 %v1447, 1.442695
      %v1477 = vpow.pop %v1476
      %v1478 = vmul.f32 %v1448, 1.442695
      %v1479 = vpow.pop %v1478
      %v1480 = vmul.f32 %v1449, 1.442695
      %v1481 = vpow.pop %v1480
      %v1482 = vmul.f32 %v1450, 1.442695
      %v1483 = vpow.pop %v1482
      %v1484 = vmul.f32 %v1451, 1.442695
      %v1485 = vpow.pop %v1484
      %v1486 = vmul.f32 %v1452, 1.442695
      %v1487 = vpow.pop %v1486
      %v1488 = vmul.f32 %v1453, 1.442695
      %v1489 = vpow.pop %v1488
      %v1490 = vmul.f32 %v1454, 1.442695
      %v1491 = vpow.pop %v1490
      %v1492 = vmul.f32 %v1455, 1.442695
      %v1493 = vpow.pop %v1492
      %v1494 = vmul.f32 %v1456, 1.442695
      %v1495 = vpow.pop %v1494
      %v1496 = vmul.f32 %v1457, 1.442695
      %v1497 = vpow.pop %v1496
      %v1498 = vmul.f32 %v1458, 1.442695
      %v1499 = vpow.pop %v1498
      %v1500 = vmul.f32 %v1459, 1.442695
      %v1501 = vpow.pop %v1500
      %v1502 = vmul.f32 %v1460, 1.442695
      %v1503 = vpow.pop %v1502
      %v1504 = vmul.f32 %v1461, 1.442695
      %v1505 = vpow.pop %v1504
      %v1506 = vmul.f32 %v1462, 1.442695
      %v1507 = vpow.pop %v1506
      %v1508 = vmul.f32 %v1463, 1.442695
      %v1509 = vpow.pop %v1508
      %v1510 = vmul.f32 %v1464, 1.442695
      %v1511 = vpow.pop %v1510
      %v1512 = vmul.f32 %v1465, 1.442695
      %v1513 = vpow.pop %v1512
      %v1514 = vmul.f32 %v1466, 1.442695
      %v1515 = vpow.pop %v1514
      %v1516 = vmul.f32 %v1467, 1.442695
      %v1517 = vpow.pop %v1516
      %v1518 = vmul.f32 %v1468, 1.442695
      %v1519 = vpow.pop %v1518
      %v1520 = vmul.f32 %v1469, 1.442695
      %v1521 = vpow.pop %v1520
      %v1522 = vmul.f32 %v1470, 1.442695
      %v1523 = vpow.pop %v1522
      %v1524 = vmul.f32 %v1471, 1.442695
      %v1525 = vpow.pop %v1524
      %v1526 = vmul.f32 %v1472, 1.442695
      %v1527 = vpow.pop %v1526
      %v1528 = vmul.f32 %v1473, 1.442695
      %v1529 = vpow.pop %v1528
      %v1530 = vmul.f32 %v1390, %v1475
      %v1531 = vmul.f32 %v1391, %v1477
      %v1532 = vmul.f32 %v1392, %v1479
      %v1533 = vmul.f32 %v1393, %v1481
      %v1534 = vmul.f32 %v1394, %v1483
      %v1535 = vmul.f32 %v1395, %v1485
      %v1536 = vmul.f32 %v1396, %v1487
      %v1537 = vmul.f32 %v1397, %v1489
      %v1538 = vmul.f32 %v1398, %v1491
      %v1539 = vmul.f32 %v1399, %v1493
      %v1540 = vmul.f32 %v1400, %v1495
      %v1541 = vmul.f32 %v1401, %v1497
      %v1542 = vmul.f32 %v1402, %v1499
      %v1543 = vmul.f32 %v1403, %v1501
      %v1544 = vmul.f32 %v1404, %v1503
      %v1545 = vmul.f32 %v1405, %v1505
      %v1546 = vmul.f32 %v1406, %v1507
      %v1547 = vmul.f32 %v1407, %v1509
      %v1548 = vmul.f32 %v1408, %v1511
      %v1549 = vmul.f32 %v1409, %v1513
      %v1550 = vmul.f32 %v1410, %v1515
      %v1551 = vmul.f32 %v1411, %v1517
      %v1552 = vmul.f32 %v1412, %v1519
      %v1553 = vmul.f32 %v1413, %v1521
      %v1554 = vmul.f32 %v1414, %v1523
      %v1555 = vmul.f32 %v1415, %v1525
      %v1556 = vmul.f32 %v1416, %v1527
      %v1557 = vmul.f32 %v1417, %v1529
      %v1558 = vadd.f32 %v1530, %v1531
      %v1559 = vadd.f32 %v1558, %v1532
      %v1560 = vadd.f32 %v1559, %v1533
      %v1561 = vadd.f32 %v1560, %v1534
      %v1562 = vadd.f32 %v1561, %v1535
      %v1563 = vadd.f32 %v1562, %v1536
      %1564 = vadd.xlane.f32.xlu0 %v1563
      %v1565 = vpop.xlane.xlu0 %1564
      %v1566 = vadd.f32 %v1537, %v1538
      %v1567 = vadd.f32 %v1566, %v1539
      %v1568 = vadd.f32 %v1567, %v1540
      %v1569 = vadd.f32 %v1568, %v1541
      %v1570 = vadd.f32 %v1569, %v1542
      %v1571 = vadd.f32 %v1570, %v1543
      %1572 = vadd.xlane.f32.xlu0 %v1571
      %v1573 = vpop.xlane.xlu0 %1572
      %v1574 = vadd.f32 %v1544, %v1545
      %v1575 = vadd.f32 %v1574, %v1546
      %v1576 = vadd.f32 %v1575, %v1547
      %v1577 = vadd.f32 %v1576, %v1548
      %v1578 = vadd.f32 %v1577, %v1549
      %v1579 = vadd.f32 %v1578, %v1550
      %1580 = vadd.xlane.f32.xlu0 %v1579
      %v1581 = vpop.xlane.xlu0 %1580
      %v1582 = vadd.f32 %v1551, %v1552
      %v1583 = vadd.f32 %v1582, %v1553
      %v1584 = vadd.f32 %v1583, %v1554
      %v1585 = vadd.f32 %v1584, %v1555
      %v1586 = vadd.f32 %v1585, %v1556
      %v1587 = vadd.f32 %v1586, %v1557
      %1588 = vadd.xlane.f32.xlu0 %v1587
      %v1589 = vpop.xlane.xlu0 %1588
      %1590 = vst.msk [vmem:[%s5] sm:$0xff] %vm1385, %v1565
      %1591 = vst.msk [vmem:[%s5 + $0x8] sm:$0xff] %vm1385, %v1573
      %1592 = vst.msk [vmem:[%s5 + $0x10] sm:$0xff] %vm1385, %v1581
      %1593 = vst.msk [vmem:[%s5 + $0x18] sm:$0xff] %vm1385, %v1589
      %v1594 = vld [vmem:[#allocation4] sm:$0xff]
      %v1595 = vld [vmem:[#allocation4 + $0x8] sm:$0xff]
      %v1596 = vld [vmem:[#allocation4 + $0x10] sm:$0xff]
      %v1597 = vld [vmem:[#allocation4 + $0x18] sm:$0xff]
      %v1598 = vld [vmem:[#allocation4 + $0x20] sm:$0xff]
      %v1599 = vld [vmem:[#allocation4 + $0x28] sm:$0xff]
      %v1600 = vld [vmem:[#allocation4 + $0x30] sm:$0xff]
      %v1601 = vld [vmem:[#allocation4 + $0x38] sm:$0xff]
      %v1602 = vld [vmem:[#allocation4 + $0x40] sm:$0xff]
      %v1603 = vld [vmem:[#allocation4 + $0x48] sm:$0xff]
      %v1604 = vld [vmem:[#allocation4 + $0x50] sm:$0xff]
      %v1605 = vld [vmem:[#allocation4 + $0x58] sm:$0xff]
      %v1606 = vld [vmem:[#allocation4 + $0x60] sm:$0xff]
      %v1607 = vld [vmem:[#allocation4 + $0x68] sm:$0xff]
      %v1608 = vld [vmem:[#allocation4 + $0x70] sm:$0xff]
      %v1609 = vld [vmem:[#allocation4 + $0x78] sm:$0xff]
      %v1610 = vld [vmem:[#allocation4 + $0x80] sm:$0xff]
      %v1611 = vld [vmem:[#allocation4 + $0x88] sm:$0xff]
      %v1612 = vld [vmem:[#allocation4 + $0x90] sm:$0xff]
      %v1613 = vld [vmem:[#allocation4 + $0x98] sm:$0xff]
      %v1614 = vld [vmem:[#allocation4 + $0xa0] sm:$0xff]
      %v1615 = vld [vmem:[#allocation4 + $0xa8] sm:$0xff]
      %v1616 = vld [vmem:[#allocation4 + $0xb0] sm:$0xff]
      %v1617 = vld [vmem:[#allocation4 + $0xb8] sm:$0xff]
      %v1618 = vld [vmem:[#allocation4 + $0xc0] sm:$0xff]
      %v1619 = vld [vmem:[#allocation4 + $0xc8] sm:$0xff]
      %v1620 = vld [vmem:[#allocation4 + $0xd0] sm:$0xff]
      %v1621 = vld [vmem:[#allocation4 + $0xd8] sm:$0xff]
      %v1622 = vmax.f32 %v1594, %v1595
      %v1623 = vmax.f32 %v1622, %v1596
      %v1624 = vmax.f32 %v1623, %v1597
      %v1625 = vmax.f32 %v1624, %v1598
      %v1626 = vmax.f32 %v1625, %v1599
      %v1627 = vmax.f32 %v1626, %v1600
      %1628 = vmax.xlane.f32.xlu0 %v1627
      %v1629 = vpop.xlane.xlu0 %1628
      %v1630 = vmax.f32 %v1601, %v1602
      %v1631 = vmax.f32 %v1630, %v1603
      %v1632 = vmax.f32 %v1631, %v1604
      %v1633 = vmax.f32 %v1632, %v1605
      %v1634 = vmax.f32 %v1633, %v1606
      %v1635 = vmax.f32 %v1634, %v1607
      %1636 = vmax.xlane.f32.xlu0 %v1635
      %v1637 = vpop.xlane.xlu0 %1636
      %v1638 = vmax.f32 %v1608, %v1609
      %v1639 = vmax.f32 %v1638, %v1610
      %v1640 = vmax.f32 %v1639, %v1611
      %v1641 = vmax.f32 %v1640, %v1612
      %v1642 = vmax.f32 %v1641, %v1613
      %v1643 = vmax.f32 %v1642, %v1614
      %1644 = vmax.xlane.f32.xlu0 %v1643
      %v1645 = vpop.xlane.xlu0 %1644
      %v1646 = vmax.f32 %v1615, %v1616
      %v1647 = vmax.f32 %v1646, %v1617
      %v1648 = vmax.f32 %v1647, %v1618
      %v1649 = vmax.f32 %v1648, %v1619
      %v1650 = vmax.f32 %v1649, %v1620
      %v1651 = vmax.f32 %v1650, %v1621
      %1652 = vmax.xlane.f32.xlu0 %v1651
      %v1653 = vpop.xlane.xlu0 %1652
      %1654 = vst.msk [vmem:[%s6] sm:$0xff] %vm1385, %v1629
      %1655 = vst.msk [vmem:[%s6 + $0x8] sm:$0xff] %vm1385, %v1637
      %1656 = vst.msk [vmem:[%s6 + $0x10] sm:$0xff] %vm1385, %v1645
      %1657 = vst.msk [vmem:[%s6 + $0x18] sm:$0xff] %vm1385, %v1653
      %v1658 = vld [vmem:[#allocation5] sm:$0xff]
      %v1659 = vld [vmem:[#allocation5 + $0x8] sm:$0xff]
      %v1660 = vld [vmem:[#allocation5 + $0x10] sm:$0xff]
      %v1661 = vld [vmem:[#allocation5 + $0x18] sm:$0xff]
      %v1662 = vld [vmem:[#allocation5 + $0x20] sm:$0xff]
      %v1663 = vld [vmem:[#allocation5 + $0x28] sm:$0xff]
      %v1664 = vld [vmem:[#allocation5 + $0x30] sm:$0xff]
      %v1665 = vld [vmem:[#allocation5 + $0x38] sm:$0xff]
      %v1666 = vld [vmem:[#allocation5 + $0x40] sm:$0xff]
      %v1667 = vld [vmem:[#allocation5 + $0x48] sm:$0xff]
      %v1668 = vld [vmem:[#allocation5 + $0x50] sm:$0xff]
      %v1669 = vld [vmem:[#allocation5 + $0x58] sm:$0xff]
      %v1670 = vld [vmem:[#allocation5 + $0x60] sm:$0xff]
      %v1671 = vld [vmem:[#allocation5 + $0x68] sm:$0xff]
      %v1672 = vld [vmem:[#allocation5 + $0x70] sm:$0xff]
      %v1673 = vld [vmem:[#allocation5 + $0x78] sm:$0xff]
      %v1674 = vld [vmem:[#allocation5 + $0x80] sm:$0xff]
      %v1675 = vld [vmem:[#allocation5 + $0x88] sm:$0xff]
      %v1676 = vld [vmem:[#allocation5 + $0x90] sm:$0xff]
      %v1677 = vld [vmem:[#allocation5 + $0x98] sm:$0xff]
      %v1678 = vld [vmem:[#allocation5 + $0xa0] sm:$0xff]
      %v1679 = vld [vmem:[#allocation5 + $0xa8] sm:$0xff]
      %v1680 = vld [vmem:[#allocation5 + $0xb0] sm:$0xff]
      %v1681 = vld [vmem:[#allocation5 + $0xb8] sm:$0xff]
      %v1682 = vld [vmem:[#allocation5 + $0xc0] sm:$0xff]
      %v1683 = vld [vmem:[#allocation5 + $0xc8] sm:$0xff]
      %v1684 = vld [vmem:[#allocation5 + $0xd0] sm:$0xff]
      %v1685 = vld [vmem:[#allocation5 + $0xd8] sm:$0xff]
      %v1686 = vld [vmem:[#allocation4] sm:$0xff]
      %v1687 = vld [vmem:[#allocation4 + $0x8] sm:$0xff]
      %v1688 = vld [vmem:[#allocation4 + $0x10] sm:$0xff]
      %v1689 = vld [vmem:[#allocation4 + $0x18] sm:$0xff]
      %v1690 = vld [vmem:[#allocation4 + $0x20] sm:$0xff]
      %v1691 = vld [vmem:[#allocation4 + $0x28] sm:$0xff]
      %v1692 = vld [vmem:[#allocation4 + $0x30] sm:$0xff]
      %v1693 = vld [vmem:[#allocation4 + $0x38] sm:$0xff]
      %v1694 = vld [vmem:[#allocation4 + $0x40] sm:$0xff]
      %v1695 = vld [vmem:[#allocation4 + $0x48] sm:$0xff]
      %v1696 = vld [vmem:[#allocation4 + $0x50] sm:$0xff]
      %v1697 = vld [vmem:[#allocation4 + $0x58] sm:$0xff]
      %v1698 = vld [vmem:[#allocation4 + $0x60] sm:$0xff]
      %v1699 = vld [vmem:[#allocation4 + $0x68] sm:$0xff]
      %v1700 = vld [vmem:[#allocation4 + $0x70] sm:$0xff]
      %v1701 = vld [vmem:[#allocation4 + $0x78] sm:$0xff]
      %v1702 = vld [vmem:[#allocation4 + $0x80] sm:$0xff]
      %v1703 = vld [vmem:[#allocation4 + $0x88] sm:$0xff]
      %v1704 = vld [vmem:[#allocation4 + $0x90] sm:$0xff]
      %v1705 = vld [vmem:[#allocation4 + $0x98] sm:$0xff]
      %v1706 = vld [vmem:[#allocation4 + $0xa0] sm:$0xff]
      %v1707 = vld [vmem:[#allocation4 + $0xa8] sm:$0xff]
      %v1708 = vld [vmem:[#allocation4 + $0xb0] sm:$0xff]
      %v1709 = vld [vmem:[#allocation4 + $0xb8] sm:$0xff]
      %v1710 = vld [vmem:[#allocation4 + $0xc0] sm:$0xff]
      %v1711 = vld [vmem:[#allocation4 + $0xc8] sm:$0xff]
      %v1712 = vld [vmem:[#allocation4 + $0xd0] sm:$0xff]
      %v1713 = vld [vmem:[#allocation4 + $0xd8] sm:$0xff]
      %v1714 = vsub.f32 %v1686, %v1629
      %v1715 = vsub.f32 %v1687, %v1629
      %v1716 = vsub.f32 %v1688, %v1629
      %v1717 = vsub.f32 %v1689, %v1629
      %v1718 = vsub.f32 %v1690, %v1629
      %v1719 = vsub.f32 %v1691, %v1629
      %v1720 = vsub.f32 %v1692, %v1629
      %v1721 = vsub.f32 %v1693, %v1637
      %v1722 = vsub.f32 %v1694, %v1637
      %v1723 = vsub.f32 %v1695, %v1637
      %v1724 = vsub.f32 %v1696, %v1637
      %v1725 = vsub.f32 %v1697, %v1637
      %v1726 = vsub.f32 %v1698, %v1637
      %v1727 = vsub.f32 %v1699, %v1637
      %v1728 = vsub.f32 %v1700, %v1645
      %v1729 = vsub.f32 %v1701, %v1645
      %v1730 = vsub.f32 %v1702, %v1645
      %v1731 = vsub.f32 %v1703, %v1645
      %v1732 = vsub.f32 %v1704, %v1645
      %v1733 = vsub.f32 %v1705, %v1645
      %v1734 = vsub.f32 %v1706, %v1645
      %v1735 = vsub.f32 %v1707, %v1653
      %v1736 = vsub.f32 %v1708, %v1653
      %v1737 = vsub.f32 %v1709, %v1653
      %v1738 = vsub.f32 %v1710, %v1653
      %v1739 = vsub.f32 %v1711, %v1653
      %v1740 = vsub.f32 %v1712, %v1653
      %v1741 = vsub.f32 %v1713, %v1653
      %v1742 = vmul.f32 %v1714, 1.442695
      %v1743 = vpow.pop %v1742
      %v1744 = vmul.f32 %v1715, 1.442695
      %v1745 = vpow.pop %v1744
      %v1746 = vmul.f32 %v1716, 1.442695
      %v1747 = vpow.pop %v1746
      %v1748 = vmul.f32 %v1717, 1.442695
      %v1749 = vpow.pop %v1748
      %v1750 = vmul.f32 %v1718, 1.442695
      %v1751 = vpow.pop %v1750
      %v1752 = vmul.f32 %v1719, 1.442695
      %v1753 = vpow.pop %v1752
      %v1754 = vmul.f32 %v1720, 1.442695
      %v1755 = vpow.pop %v1754
      %v1756 = vmul.f32 %v1721, 1.442695
      %v1757 = vpow.pop %v1756
      %v1758 = vmul.f32 %v1722, 1.442695
      %v1759 = vpow.pop %v1758
      %v1760 = vmul.f32 %v1723, 1.442695
      %v1761 = vpow.pop %v1760
      %v1762 = vmul.f32 %v1724, 1.442695
      %v1763 = vpow.pop %v1762
      %v1764 = vmul.f32 %v1725, 1.442695
      %v1765 = vpow.pop %v1764
      %v1766 = vmul.f32 %v1726, 1.442695
      %v1767 = vpow.pop %v1766
      %v1768 = vmul.f32 %v1727, 1.442695
      %v1769 = vpow.pop %v1768
      %v1770 = vmul.f32 %v1728, 1.442695
      %v1771 = vpow.pop %v1770
      %v1772 = vmul.f32 %v1729, 1.442695
      %v1773 = vpow.pop %v1772
      %v1774 = vmul.f32 %v1730, 1.442695
      %v1775 = vpow.pop %v1774
      %v1776 = vmul.f32 %v1731, 1.442695
      %v1777 = vpow.pop %v1776
      %v1778 = vmul.f32 %v1732, 1.442695
      %v1779 = vpow.pop %v1778
      %v1780 = vmul.f32 %v1733, 1.442695
      %v1781 = vpow.pop %v1780
      %v1782 = vmul.f32 %v1734, 1.442695
      %v1783 = vpow.pop %v1782
      %v1784 = vmul.f32 %v1735, 1.442695
      %v1785 = vpow.pop %v1784
      %v1786 = vmul.f32 %v1736, 1.442695
      %v1787 = vpow.pop %v1786
      %v1788 = vmul.f32 %v1737, 1.442695
      %v1789 = vpow.pop %v1788
      %v1790 = vmul.f32 %v1738, 1.442695
      %v1791 = vpow.pop %v1790
      %v1792 = vmul.f32 %v1739, 1.442695
      %v1793 = vpow.pop %v1792
      %v1794 = vmul.f32 %v1740, 1.442695
      %v1795 = vpow.pop %v1794
      %v1796 = vmul.f32 %v1741, 1.442695
      %v1797 = vpow.pop %v1796
      %v1798 = vmul.f32 %v1658, %v1743
      %v1799 = vmul.f32 %v1659, %v1745
      %v1800 = vmul.f32 %v1660, %v1747
      %v1801 = vmul.f32 %v1661, %v1749
      %v1802 = vmul.f32 %v1662, %v1751
      %v1803 = vmul.f32 %v1663, %v1753
      %v1804 = vmul.f32 %v1664, %v1755
      %v1805 = vmul.f32 %v1665, %v1757
      %v1806 = vmul.f32 %v1666, %v1759
      %v1807 = vmul.f32 %v1667, %v1761
      %v1808 = vmul.f32 %v1668, %v1763
      %v1809 = vmul.f32 %v1669, %v1765
      %v1810 = vmul.f32 %v1670, %v1767
      %v1811 = vmul.f32 %v1671, %v1769
      %v1812 = vmul.f32 %v1672, %v1771
      %v1813 = vmul.f32 %v1673, %v1773
      %v1814 = vmul.f32 %v1674, %v1775
      %v1815 = vmul.f32 %v1675, %v1777
      %v1816 = vmul.f32 %v1676, %v1779
      %v1817 = vmul.f32 %v1677, %v1781
      %v1818 = vmul.f32 %v1678, %v1783
      %v1819 = vmul.f32 %v1679, %v1785
      %v1820 = vmul.f32 %v1680, %v1787
      %v1821 = vmul.f32 %v1681, %v1789
      %v1822 = vmul.f32 %v1682, %v1791
      %v1823 = vmul.f32 %v1683, %v1793
      %v1824 = vmul.f32 %v1684, %v1795
      %v1825 = vmul.f32 %v1685, %v1797
      %v1826 = vadd.f32 %v1798, %v1799
      %v1827 = vadd.f32 %v1826, %v1800
      %v1828 = vadd.f32 %v1827, %v1801
      %v1829 = vadd.f32 %v1828, %v1802
      %v1830 = vadd.f32 %v1829, %v1803
      %v1831 = vadd.f32 %v1830, %v1804
      %1832 = vadd.xlane.f32.xlu0 %v1831
      %v1833 = vpop.xlane.xlu0 %1832
      %v1834 = vadd.f32 %v1805, %v1806
      %v1835 = vadd.f32 %v1834, %v1807
      %v1836 = vadd.f32 %v1835, %v1808
      %v1837 = vadd.f32 %v1836, %v1809
      %v1838 = vadd.f32 %v1837, %v1810
      %v1839 = vadd.f32 %v1838, %v1811
      %1840 = vadd.xlane.f32.xlu0 %v1839
      %v1841 = vpop.xlane.xlu0 %1840
      %v1842 = vadd.f32 %v1812, %v1813
      %v1843 = vadd.f32 %v1842, %v1814
      %v1844 = vadd.f32 %v1843, %v1815
      %v1845 = vadd.f32 %v1844, %v1816
      %v1846 = vadd.f32 %v1845, %v1817
      %v1847 = vadd.f32 %v1846, %v1818
      %1848 = vadd.xlane.f32.xlu0 %v1847
      %v1849 = vpop.xlane.xlu0 %1848
      %v1850 = vadd.f32 %v1819, %v1820
      %v1851 = vadd.f32 %v1850, %v1821
      %v1852 = vadd.f32 %v1851, %v1822
      %v1853 = vadd.f32 %v1852, %v1823
      %v1854 = vadd.f32 %v1853, %v1824
      %v1855 = vadd.f32 %v1854, %v1825
      %1856 = vadd.xlane.f32.xlu0 %v1855
      %v1857 = vpop.xlane.xlu0 %1856
      %1858 = vst.msk [vmem:[%s7] sm:$0xff] %vm1385, %v1833
      %1859 = vst.msk [vmem:[%s7 + $0x8] sm:$0xff] %vm1385, %v1841
      %1860 = vst.msk [vmem:[%s7 + $0x10] sm:$0xff] %vm1385, %v1849
      %1861 = vst.msk [vmem:[%s7 + $0x18] sm:$0xff] %vm1385, %v1857
    $region33: #{tpu_custom_call.1} parent=1 // pred_fallthru
      _
    // Predicated region
    $region34: #{tpu_custom_call.1} parent=1 // pred_check
      _
    $region35: #{tpu_custom_call.1} parent=1 // pred_check_branch
      %1863 = sbr.rel (0) target = $region37
    $region36: #{tpu_custom_call.1} parent=1 // pred_region
      %s1864 = sadd.s32 0, 0
      %s1865 = smul.u32 7, %s1864
      %s1867 = ssub.s32 3584, 3584
      %1868 = vsyncadd [#allocation8], %s1867
      %s1869 = smul.addr %s1865, 128
      %s1870 = scalar_lea.hbm %s3, %s1869
      %s1871 = sshll.u32 [#allocation12], 4
      %s1872 = int_to_ptr.vmem [resolvable:$true] %s1871
      %1877 = dma.vmem_to_hbm [thread:$0]  %s1872, 3584, %s1870, [#allocation8], 896, 896, 56
    $region37: #{tpu_custom_call.1} parent=1 // pred_fallthru
      _
    // Predicated region
    $region38: #{tpu_custom_call.1} parent=1 // pred_check
      _
    $region39: #{tpu_custom_call.1} parent=1 // pred_check_branch
      %1879 = sbr.rel (0) target = $region41
    $region40: #{tpu_custom_call.1} parent=1 // pred_region
      _
    $region41: #{tpu_custom_call.1} parent=1 // pred_fallthru
      _
    // Predicated region
    $region42: #{tpu_custom_call.1} parent=1 // pred_check
      _
    $region43: #{tpu_custom_call.1} parent=1 // pred_check_branch
      %1881 = sbr.rel (0) target = $region45
    $region44: #{tpu_custom_call.1} parent=1 // pred_region
      _
    $region45: #{tpu_custom_call.1} parent=1 // pred_fallthru
      _
    // Predicated region
    $region46: #{tpu_custom_call.1} parent=1 // pred_check
      _
    $region47: #{tpu_custom_call.1} parent=1 // pred_check_branch
      %1883 = sbr.rel (0) target = $region49
    $region48: #{tpu_custom_call.1} parent=1 // pred_region
      _
    $region49: #{tpu_custom_call.1} parent=1 // pred_fallthru
      _
    // Predicated region
    $region50: #{tpu_custom_call.1} parent=1 // pred_check
      _
    $region51: #{tpu_custom_call.1} parent=1 // pred_check_branch
      %1885 = sbr.rel (0) target = $region53
    $region52: #{tpu_custom_call.1} parent=1 // pred_region
      _
    $region53: #{tpu_custom_call.1} parent=1 // pred_fallthru
      _
    // Predicated region
    $region54: #{tpu_custom_call.1} parent=1 // pred_check
      _
    $region55: #{tpu_custom_call.1} parent=1 // pred_check_branch
      %1887 = sbr.rel (0) target = $region57
    $region56: #{tpu_custom_call.1} parent=1 // pred_region
      %1888 = dma.done [#allocation8], 3584
    $region57: #{tpu_custom_call.1} parent=1 // pred_fallthru
      _
    // Predicated region
    $region58: #{tpu_custom_call.1} parent=1 // pred_check
      _
    $region59: #{tpu_custom_call.1} parent=1 // pred_check_branch
      %1890 = sbr.rel (0) target = $region61
    $region60: #{tpu_custom_call.1} parent=1 // pred_region
      _
    $region61: #{tpu_custom_call.1} parent=1 // pred_fallthru
      _
    // Predicated region
    $region62: #{tpu_custom_call.1} parent=1 // pred_check
      _
    $region63: #{tpu_custom_call.1} parent=1 // pred_check_branch
      %1892 = sbr.rel (0) target = $region65
    $region64: #{tpu_custom_call.1} parent=1 // pred_region
      _
    $region65: #{tpu_custom_call.1} parent=1 // pred_fallthru
      _
    // Predicated region
    $region66: #{tpu_custom_call.1} parent=1 // pred_check
      _
    $region67: #{tpu_custom_call.1} parent=1 // pred_check_branch
      %1894 = sbr.rel (0) target = $region69
    $region68: #{tpu_custom_call.1} parent=1 // pred_region
      _
    $region69: #{tpu_custom_call.1} parent=1 // pred_fallthru
      _
    // Predicated region
    $region70: #{tpu_custom_call.1} parent=1 // pred_check
      _
    $region71: #{tpu_custom_call.1} parent=1 // pred_check_branch
      %1896 = sbr.rel (0) target = $region73
    $region72: #{tpu_custom_call.1} parent=1 // pred_region
      _
    $region73: #{tpu_custom_call.1} parent=1 // pred_fallthru
      _
    %1897 = vsyncpa [#allocation7], 1
    %1898 = vsyncpa [#allocation10], 1
    %1899 = vsyncpa [#allocation8], 1

</llo_original>
